<compile_context>
chip_gen: v5e
topology: v5e:2x2
jax: 0.10.0
libtpu: 0.0.40
codegen_flags: <defaults>
</compile_context>

<pallas_src>
import functools

import jax
import jax.numpy as jnp
from jax.experimental import pallas as pl
from jax.experimental.pallas import tpu as pltpu


def _round_up(a: int, b: int) -> int:
    return (a + b - 1) // b * b


def conv_module_kernel(xl_ref, xc_ref, xr_ref,
                       w1a_ref, w1g_ref, b1a_ref, b1g_ref,
                       wdw_ref, bdw_ref, w2_ref, b2_ref,
                       o_ref, *, t_valid, t_tile, halo, ksize):
    t = pl.program_id(1)
    pad = (ksize - 1) // 2
    t_full = t_tile + 2 * halo
    cp = xc_ref.shape[-1]

    # Assemble the haloed time window; all pieces are sublane-aligned blocks (bf16).
    x_full = jnp.concatenate([xl_ref[0], xc_ref[0], xr_ref[0]], axis=0)   # (t_full, cp)

    # pointwise_conv1 split into the two GLU halves: bf16 MXU operands, f32 accumulate.
    a = jnp.dot(x_full, w1a_ref[...], preferred_element_type=jnp.float32) + b1a_ref[...]
    g = jnp.dot(x_full, w1g_ref[...], preferred_element_type=jnp.float32) + b1g_ref[...]
    glu = a * jax.nn.sigmoid(g)                                           # (t_full, cp) f32

    # Zero rows outside the valid sequence: implements the depthwise conv's zero
    # padding and neutralizes clamped halo blocks / time padding.
    gidx = jax.lax.broadcasted_iota(jnp.int32, (t_full, 1), 0) + (t * t_tile - halo)
    glu = jnp.where((gidx >= 0) & (gidx < t_valid), glu, 0.0)

    # Depthwise conv along time: K static taps, per-channel weights (VPU mul-adds).
    base = halo - pad
    acc = jnp.zeros((t_tile, cp), jnp.float32)
    for k in range(ksize):                                                # static unroll
        acc = acc + glu[base + k:base + k + t_tile, :] * wdw_ref[k:k + 1, :]
    acc = acc + bdw_ref[...]

    # NOTE: `self.norm(x)` in the reference forward discards its result, so the
    # BatchNorm is intentionally a no-op here (matches the module as written).

    act = acc * jax.nn.sigmoid(acc)                                       # SiLU, f32

    # pointwise_conv2: bf16 MXU operands, f32 accumulate.
    out = jnp.dot(act.astype(jnp.bfloat16), w2_ref[...],
                  preferred_element_type=jnp.float32) + b2_ref[...]
    o_ref[0] = out.astype(o_ref.dtype)


def prepare_params(params, channels, kernel_size):
    """One-time weight preprocessing (hoisted out of the per-call path):
    transpose k=1 conv weights, split the GLU halves, zero-pad channels to a
    multiple of 128, cast MXU weights to bf16 (biases / depthwise taps stay f32)."""
    C, K = channels, kernel_size
    Cp = max(128, _round_up(C, 128))

    def pad_mat(w_t):   # (C, C) -> (Cp, Cp) bf16
        return jnp.zeros((Cp, Cp), jnp.bfloat16).at[:C, :C].set(w_t.astype(jnp.bfloat16))

    def pad_vec(v):     # (C,) -> (1, Cp) f32
        return jnp.zeros((1, Cp), jnp.float32).at[0, :C].set(v.astype(jnp.float32))

    w1 = params["w1"]                                   # (2C, C)
    wdw = jnp.zeros((K, Cp), jnp.float32).at[:, :C].set(params["wdw"].astype(jnp.float32))
    return {
        "w1a": pad_mat(w1[:C].T), "w1g": pad_mat(w1[C:].T),
        "b1a": pad_vec(params["b1"][:C]), "b1g": pad_vec(params["b1"][C:]),
        "wdw": wdw, "bdw": pad_vec(params["bdw"]),
        "w2": pad_mat(params["w2"].T), "b2": pad_vec(params["b2"]),
    }


def conv_module_forward(x, prep, *, t_tile=256):
    """x: (B, T, C) float32. Returns (B, T, C) float32."""
    B, T, C = x.shape
    K = prep["wdw"].shape[0]
    Cp = prep["w2"].shape[0]
    pad_dw = (K - 1) // 2

    SUB = 16                                            # bf16 sublane packing granularity
    halo = _round_up(max(pad_dw, 1), SUB)               # halo rows per side, sublane-aligned
    tt = _round_up(min(t_tile, _round_up(T, halo)), halo)
    t_pad = _round_up(T, tt)
    n_t = t_pad // tt
    r = tt // halo                                      # center-tile size in halo units
    n_h = t_pad // halo

    # Activations in bf16 at the kernel boundary (halves HBM read bytes).
    x_p = jnp.pad(x, ((0, 0), (0, t_pad - T), (0, Cp - C))).astype(jnp.bfloat16)

    def const(shape):
        return pl.BlockSpec(shape, lambda b, t: (0,) * len(shape))

    kernel = functools.partial(conv_module_kernel, t_valid=T, t_tile=tt,
                               halo=halo, ksize=K)

    out = pl.pallas_call(
        kernel,
        out_shape=jax.ShapeDtypeStruct((B, t_pad, Cp), jnp.float32),
        grid_spec=pltpu.PrefetchScalarGridSpec(
            num_scalar_prefetch=0,
            grid=(B, n_t),
            in_specs=[
                # left halo / center tile / right halo views of the same input array
                pl.BlockSpec((1, halo, Cp),
                             lambda b, t: (b, jnp.maximum(t * r - 1, 0), 0)),
                pl.BlockSpec((1, tt, Cp), lambda b, t: (b, t, 0)),
                pl.BlockSpec((1, halo, Cp),
                             lambda b, t: (b, jnp.minimum((t + 1) * r, n_h - 1), 0)),
                const((Cp, Cp)), const((Cp, Cp)),       # w1a, w1g
                const((1, Cp)), const((1, Cp)),         # b1a, b1g
                const((K, Cp)), const((1, Cp)),         # wdw, bdw
                const((Cp, Cp)), const((1, Cp)),        # w2, b2
            ],
            out_specs=pl.BlockSpec((1, tt, Cp), lambda b, t: (b, t, 0)),
        ),
        compiler_params=pltpu.CompilerParams(
            # Both grid axes are independent -> megacore-shardable on v7x.
            dimension_semantics=("parallel", "parallel"),
            # Explicit VMEM budget sized to fit v7x's 64 MiB with headroom.
            vmem_limit_bytes=48 * 1024 * 1024,
        ),
    )(x_p, x_p, x_p,
      prep["w1a"], prep["w1g"], prep["b1a"], prep["b1g"],
      prep["wdw"], prep["bdw"], prep["w2"], prep["b2"])

    return out[:, :T, :C]


def ref_forward(x, params):
    """Pure-JAX reference of the PyTorch forward (mask_pad=None), with matmul
    operands cast to bf16 to mirror the kernel's MXU precision."""
    B, T, C = x.shape
    K = params["wdw"].shape[0]
    pad = (K - 1) // 2
    xb = x.astype(jnp.bfloat16)
    w1 = params["w1"].astype(jnp.bfloat16)
    h = jnp.einsum("btc,oc->bto", xb, w1,
                   preferred_element_type=jnp.float32) + params["b1"]
    a, g = h[..., :C], h[..., C:]
    glu = a * jax.nn.sigmoid(g)
    gp = jnp.pad(glu, ((0, 0), (pad, pad), (0, 0)))
    dw = sum(gp[:, k:k + T, :] * params["wdw"][k][None, None, :] for k in range(K))
    dw = dw + params["bdw"]
    act = dw * jax.nn.sigmoid(dw)
    return jnp.einsum("btc,oc->bto", act.astype(jnp.bfloat16),
                      params["w2"].astype(jnp.bfloat16),
                      preferred_element_type=jnp.float32) + params["b2"]


def init_params(key, channels, kernel_size):
    """Deterministic synthetic parameters matching the nn.Module shapes."""
    C, K = channels, kernel_size
    ks = jax.random.split(key, 6)
    scale = 0.1
    return {
        # pointwise_conv1: Conv1d(C, 2C, 1) -> weight (2C, C, 1) squeezed to (2C, C)
        "w1": scale * jax.random.normal(ks[0], (2 * C, C), jnp.float32),
        "b1": scale * jax.random.normal(ks[1], (2 * C,), jnp.float32),
        # depthwise_conv: Conv1d(C, C, K, groups=C) -> weight (C, 1, K) stored as (K, C)
        "wdw": scale * jax.random.normal(ks[2], (K, C), jnp.float32),
        "bdw": scale * jax.random.normal(ks[3], (C,), jnp.float32),
        # pointwise_conv2: Conv1d(C, C, 1) -> weight (C, C, 1) squeezed to (C, C)
        "w2": scale * jax.random.normal(ks[4], (C, C), jnp.float32),
        "b2": scale * jax.random.normal(ks[5], (C,), jnp.float32),
        # TODO(synk): BatchNorm1d params exist in the module but its output is discarded
        # in forward(), so they are not instantiated here.
    }


if __name__ == "__main__":
    B, T, C, K = 2, 80, 32, 15   # batch, time, channels, depthwise kernel size (odd)
    key = jax.random.PRNGKey(0)
    kx, kp = jax.random.split(key)
    x = jax.random.normal(kx, (B, T, C), jnp.float32)
    params = init_params(kp, C, K)
    prep = prepare_params(params, C, K)

    # Small t_tile so the demo exercises multiple time tiles, halo clamping and
    # time padding (production default is t_tile=256).
    out = conv_module_forward(x, prep, t_tile=32)
    out = jax.block_until_ready(out)

    ref = ref_forward(x, params)
    assert out.shape == (B, T, C)
    max_err = float(jnp.max(jnp.abs(out - ref)))
    assert jnp.allclose(out, ref, atol=2e-3, rtol=2e-3), max_err

    print("KERNEL_OK")
</pallas_src>

<mosaic_0001>
module attributes {stable_mosaic.version = 11 : i64} {
  func.func @conv_module_kernel(%arg0: i32, %arg1: i32, %arg2: memref<1x16x128xbf16, #tpu.memory_space<vmem>>, %arg3: memref<1x32x128xbf16, #tpu.memory_space<vmem>>, %arg4: memref<1x16x128xbf16, #tpu.memory_space<vmem>>, %arg5: memref<128x128xbf16, #tpu.memory_space<vmem>>, %arg6: memref<128x128xbf16, #tpu.memory_space<vmem>>, %arg7: memref<1x128xf32, #tpu.memory_space<vmem>>, %arg8: memref<1x128xf32, #tpu.memory_space<vmem>>, %arg9: memref<15x128xf32, #tpu.memory_space<vmem>>, %arg10: memref<1x128xf32, #tpu.memory_space<vmem>>, %arg11: memref<128x128xbf16, #tpu.memory_space<vmem>>, %arg12: memref<1x128xf32, #tpu.memory_space<vmem>>, %arg13: memref<1x32x128xf32, #tpu.memory_space<vmem>>) attributes {dimension_semantics = [#tpu.dimension_semantics<parallel>, #tpu.dimension_semantics<parallel>], iteration_bounds = array<i64: 2, 3>, scalar_prefetch = 0 : i64, scratch_operands = 0 : i64, tpu.core_type = #tpu.core_type<tc>, window_params = [{transform_indices = @transform_0, window_bounds = array<i64: 1, 16, 128>}, {transform_indices = @transform_1, window_bounds = array<i64: 1, 32, 128>}, {transform_indices = @transform_2, window_bounds = array<i64: 1, 16, 128>}, {pipeline_mode = #tpu.pipeline_mode<synchronous>, transform_indices = @transform_3, window_bounds = array<i64: 128, 128>}, {pipeline_mode = #tpu.pipeline_mode<synchronous>, transform_indices = @transform_4, window_bounds = array<i64: 128, 128>}, {pipeline_mode = #tpu.pipeline_mode<synchronous>, transform_indices = @transform_5, window_bounds = array<i64: 1, 128>}, {pipeline_mode = #tpu.pipeline_mode<synchronous>, transform_indices = @transform_6, window_bounds = array<i64: 1, 128>}, {pipeline_mode = #tpu.pipeline_mode<synchronous>, transform_indices = @transform_7, window_bounds = array<i64: 15, 128>}, {pipeline_mode = #tpu.pipeline_mode<synchronous>, transform_indices = @transform_8, window_bounds = array<i64: 1, 128>}, {pipeline_mode = #tpu.pipeline_mode<synchronous>, transform_indices = @transform_9, window_bounds = array<i64: 128, 128>}, {pipeline_mode = #tpu.pipeline_mode<synchronous>, transform_indices = @transform_10, window_bounds = array<i64: 1, 128>}, {transform_indices = @transform_11, window_bounds = array<i64: 1, 32, 128>}]} {
    %c0 = arith.constant 0 : index
    %c0_0 = arith.constant 0 : index
    %c0_1 = arith.constant 0 : index
    %0 = vector.load %arg2[%c0, %c0_0, %c0_1] : memref<1x16x128xbf16, #tpu.memory_space<vmem>>, vector<1x16x128xbf16>
    %1 = vector.shape_cast %0 : vector<1x16x128xbf16> to vector<16x128xbf16>
    %c0_2 = arith.constant 0 : index
    %c0_3 = arith.constant 0 : index
    %c0_4 = arith.constant 0 : index
    %2 = vector.load %arg3[%c0_2, %c0_3, %c0_4] : memref<1x32x128xbf16, #tpu.memory_space<vmem>>, vector<1x32x128xbf16>
    %3 = vector.shape_cast %2 : vector<1x32x128xbf16> to vector<32x128xbf16>
    %c0_5 = arith.constant 0 : index
    %c0_6 = arith.constant 0 : index
    %c0_7 = arith.constant 0 : index
    %4 = vector.load %arg4[%c0_5, %c0_6, %c0_7] : memref<1x16x128xbf16, #tpu.memory_space<vmem>>, vector<1x16x128xbf16>
    %5 = vector.shape_cast %4 : vector<1x16x128xbf16> to vector<16x128xbf16>
    %6 = tpu.concatenate %1, %3, %5 in 0 : vector<16x128xbf16>, vector<32x128xbf16>, vector<16x128xbf16> -> vector<64x128xbf16>
    %c0_8 = arith.constant 0 : index
    %c0_9 = arith.constant 0 : index
    %7 = vector.load %arg5[%c0_8, %c0_9] : memref<128x128xbf16, #tpu.memory_space<vmem>>, vector<128x128xbf16>
    %cst = arith.constant dense<0.000000e+00> : vector<64x128xf32>
    %8 = tpu.matmul %6, %7, %cst {dimension_numbers = #tpu.dot_dimension_numbers<[1], [0], [0], [1], [0, 0, 1, 1], [], []>} : vector<64x128xbf16>, vector<128x128xbf16>, vector<64x128xf32> -> vector<64x128xf32>
    %c0_10 = arith.constant 0 : index
    %c0_11 = arith.constant 0 : index
    %9 = vector.load %arg7[%c0_10, %c0_11] : memref<1x128xf32, #tpu.memory_space<vmem>>, vector<1x128xf32>
    %10 = vector.broadcast %9 : vector<1x128xf32> to vector<64x128xf32>
    %11 = arith.addf %8, %10 : vector<64x128xf32>
    %c0_12 = arith.constant 0 : index
    %c0_13 = arith.constant 0 : index
    %12 = vector.load %arg6[%c0_12, %c0_13] : memref<128x128xbf16, #tpu.memory_space<vmem>>, vector<128x128xbf16>
    %cst_14 = arith.constant dense<0.000000e+00> : vector<64x128xf32>
    %13 = tpu.matmul %6, %12, %cst_14 {dimension_numbers = #tpu.dot_dimension_numbers<[1], [0], [0], [1], [0, 0, 1, 1], [], []>} : vector<64x128xbf16>, vector<128x128xbf16>, vector<64x128xf32> -> vector<64x128xf32>
    %c0_15 = arith.constant 0 : index
    %c0_16 = arith.constant 0 : index
    %14 = vector.load %arg8[%c0_15, %c0_16] : memref<1x128xf32, #tpu.memory_space<vmem>>, vector<1x128xf32>
    %15 = vector.broadcast %14 : vector<1x128xf32> to vector<64x128xf32>
    %16 = arith.addf %13, %15 : vector<64x128xf32>
    %17 = arith.negf %16 : vector<64x128xf32>
    %18 = math.exp %17 : vector<64x128xf32>
    %cst_17 = arith.constant 1.000000e+00 : f32
    %19 = vector.broadcast %cst_17 : f32 to vector<64x128xf32>
    %20 = arith.addf %19, %18 : vector<64x128xf32>
    %21 = arith.divf %19, %20 : vector<64x128xf32>
    %22 = arith.mulf %11, %21 : vector<64x128xf32>
    %23 = tpu.iota {dimensions = array<i32: 0>} : vector<64x1xi32>
    %c32_i32 = arith.constant 32 : i32
    %24 = arith.muli %arg1, %c32_i32 : i32
    %c16_i32 = arith.constant 16 : i32
    %25 = arith.subi %24, %c16_i32 : i32
    %26 = vector.broadcast %25 : i32 to vector<64x1xi32>
    %27 = arith.addi %23, %26 : vector<64x1xi32>
    %c0_i32 = arith.constant 0 : i32
    %28 = vector.broadcast %c0_i32 : i32 to vector<64x1xi32>
    %29 = arith.cmpi sge, %27, %28 : vector<64x1xi32>
    %c80_i32 = arith.constant 80 : i32
    %30 = vector.broadcast %c80_i32 : i32 to vector<64x1xi32>
    %31 = arith.cmpi slt, %27, %30 : vector<64x1xi32>
    %32 = arith.andi %29, %31 : vector<64x1xi1>
    %cst_18 = arith.constant 0.000000e+00 : f32
    %33 = vector.shape_cast %32 : vector<64x1xi1> to vector<64x1xi1>
    %34 = vector.broadcast %33 : vector<64x1xi1> to vector<64x128xi1>
    %35 = vector.broadcast %cst_18 : f32 to vector<64x128xf32>
    %36 = arith.select %34, %22, %35 : vector<64x128xi1>, vector<64x128xf32>
    %cst_19 = arith.constant 0.000000e+00 : f32
    %37 = vector.broadcast %cst_19 : f32 to vector<32x128xf32>
    %38 = vector.extract_strided_slice %36 {offsets = [9, 0], sizes = [32, 128], strides = [1, 1]} : vector<64x128xf32> to vector<32x128xf32>
    %c0_20 = arith.constant 0 : index
    %c0_21 = arith.constant 0 : index
    %39 = vector.load %arg9[%c0_20, %c0_21] : memref<15x128xf32, #tpu.memory_space<vmem>>, vector<1x128xf32>
    %40 = vector.broadcast %39 : vector<1x128xf32> to vector<32x128xf32>
    %41 = arith.mulf %38, %40 : vector<32x128xf32>
    %42 = arith.addf %37, %41 : vector<32x128xf32>
    %43 = vector.extract_strided_slice %36 {offsets = [10, 0], sizes = [32, 128], strides = [1, 1]} : vector<64x128xf32> to vector<32x128xf32>
    %c1 = arith.constant 1 : index
    %c0_22 = arith.constant 0 : index
    %44 = vector.load %arg9[%c1, %c0_22] : memref<15x128xf32, #tpu.memory_space<vmem>>, vector<1x128xf32>
    %45 = vector.broadcast %44 : vector<1x128xf32> to vector<32x128xf32>
    %46 = arith.mulf %43, %45 : vector<32x128xf32>
    %47 = arith.addf %42, %46 : vector<32x128xf32>
    %48 = vector.extract_strided_slice %36 {offsets = [11, 0], sizes = [32, 128], strides = [1, 1]} : vector<64x128xf32> to vector<32x128xf32>
    %c2 = arith.constant 2 : index
    %c0_23 = arith.constant 0 : index
    %49 = vector.load %arg9[%c2, %c0_23] : memref<15x128xf32, #tpu.memory_space<vmem>>, vector<1x128xf32>
    %50 = vector.broadcast %49 : vector<1x128xf32> to vector<32x128xf32>
    %51 = arith.mulf %48, %50 : vector<32x128xf32>
    %52 = arith.addf %47, %51 : vector<32x128xf32>
    %53 = vector.extract_strided_slice %36 {offsets = [12, 0], sizes = [32, 128], strides = [1, 1]} : vector<64x128xf32> to vector<32x128xf32>
    %c3 = arith.constant 3 : index
    %c0_24 = arith.constant 0 : index
    %54 = vector.load %arg9[%c3, %c0_24] : memref<15x128xf32, #tpu.memory_space<vmem>>, vector<1x128xf32>
    %55 = vector.broadcast %54 : vector<1x128xf32> to vector<32x128xf32>
    %56 = arith.mulf %53, %55 : vector<32x128xf32>
    %57 = arith.addf %52, %56 : vector<32x128xf32>
    %58 = vector.extract_strided_slice %36 {offsets = [13, 0], sizes = [32, 128], strides = [1, 1]} : vector<64x128xf32> to vector<32x128xf32>
    %c4 = arith.constant 4 : index
    %c0_25 = arith.constant 0 : index
    %59 = vector.load %arg9[%c4, %c0_25] : memref<15x128xf32, #tpu.memory_space<vmem>>, vector<1x128xf32>
    %60 = vector.broadcast %59 : vector<1x128xf32> to vector<32x128xf32>
    %61 = arith.mulf %58, %60 : vector<32x128xf32>
    %62 = arith.addf %57, %61 : vector<32x128xf32>
    %63 = vector.extract_strided_slice %36 {offsets = [14, 0], sizes = [32, 128], strides = [1, 1]} : vector<64x128xf32> to vector<32x128xf32>
    %c5 = arith.constant 5 : index
    %c0_26 = arith.constant 0 : index
    %64 = vector.load %arg9[%c5, %c0_26] : memref<15x128xf32, #tpu.memory_space<vmem>>, vector<1x128xf32>
    %65 = vector.broadcast %64 : vector<1x128xf32> to vector<32x128xf32>
    %66 = arith.mulf %63, %65 : vector<32x128xf32>
    %67 = arith.addf %62, %66 : vector<32x128xf32>
    %68 = vector.extract_strided_slice %36 {offsets = [15, 0], sizes = [32, 128], strides = [1, 1]} : vector<64x128xf32> to vector<32x128xf32>
    %c6 = arith.constant 6 : index
    %c0_27 = arith.constant 0 : index
    %69 = vector.load %arg9[%c6, %c0_27] : memref<15x128xf32, #tpu.memory_space<vmem>>, vector<1x128xf32>
    %70 = vector.broadcast %69 : vector<1x128xf32> to vector<32x128xf32>
    %71 = arith.mulf %68, %70 : vector<32x128xf32>
    %72 = arith.addf %67, %71 : vector<32x128xf32>
    %73 = vector.extract_strided_slice %36 {offsets = [16, 0], sizes = [32, 128], strides = [1, 1]} : vector<64x128xf32> to vector<32x128xf32>
    %c7 = arith.constant 7 : index
    %c0_28 = arith.constant 0 : index
    %74 = vector.load %arg9[%c7, %c0_28] : memref<15x128xf32, #tpu.memory_space<vmem>>, vector<1x128xf32>
    %75 = vector.broadcast %74 : vector<1x128xf32> to vector<32x128xf32>
    %76 = arith.mulf %73, %75 : vector<32x128xf32>
    %77 = arith.addf %72, %76 : vector<32x128xf32>
    %78 = vector.extract_strided_slice %36 {offsets = [17, 0], sizes = [32, 128], strides = [1, 1]} : vector<64x128xf32> to vector<32x128xf32>
    %c8 = arith.constant 8 : index
    %c0_29 = arith.constant 0 : index
    %79 = vector.load %arg9[%c8, %c0_29] : memref<15x128xf32, #tpu.memory_space<vmem>>, vector<1x128xf32>
    %80 = vector.broadcast %79 : vector<1x128xf32> to vector<32x128xf32>
    %81 = arith.mulf %78, %80 : vector<32x128xf32>
    %82 = arith.addf %77, %81 : vector<32x128xf32>
    %83 = vector.extract_strided_slice %36 {offsets = [18, 0], sizes = [32, 128], strides = [1, 1]} : vector<64x128xf32> to vector<32x128xf32>
    %c9 = arith.constant 9 : index
    %c0_30 = arith.constant 0 : index
    %84 = vector.load %arg9[%c9, %c0_30] : memref<15x128xf32, #tpu.memory_space<vmem>>, vector<1x128xf32>
    %85 = vector.broadcast %84 : vector<1x128xf32> to vector<32x128xf32>
    %86 = arith.mulf %83, %85 : vector<32x128xf32>
    %87 = arith.addf %82, %86 : vector<32x128xf32>
    %88 = vector.extract_strided_slice %36 {offsets = [19, 0], sizes = [32, 128], strides = [1, 1]} : vector<64x128xf32> to vector<32x128xf32>
    %c10 = arith.constant 10 : index
    %c0_31 = arith.constant 0 : index
    %89 = vector.load %arg9[%c10, %c0_31] : memref<15x128xf32, #tpu.memory_space<vmem>>, vector<1x128xf32>
    %90 = vector.broadcast %89 : vector<1x128xf32> to vector<32x128xf32>
    %91 = arith.mulf %88, %90 : vector<32x128xf32>
    %92 = arith.addf %87, %91 : vector<32x128xf32>
    %93 = vector.extract_strided_slice %36 {offsets = [20, 0], sizes = [32, 128], strides = [1, 1]} : vector<64x128xf32> to vector<32x128xf32>
    %c11 = arith.constant 11 : index
    %c0_32 = arith.constant 0 : index
    %94 = vector.load %arg9[%c11, %c0_32] : memref<15x128xf32, #tpu.memory_space<vmem>>, vector<1x128xf32>
    %95 = vector.broadcast %94 : vector<1x128xf32> to vector<32x128xf32>
    %96 = arith.mulf %93, %95 : vector<32x128xf32>
    %97 = arith.addf %92, %96 : vector<32x128xf32>
    %98 = vector.extract_strided_slice %36 {offsets = [21, 0], sizes = [32, 128], strides = [1, 1]} : vector<64x128xf32> to vector<32x128xf32>
    %c12 = arith.constant 12 : index
    %c0_33 = arith.constant 0 : index
    %99 = vector.load %arg9[%c12, %c0_33] : memref<15x128xf32, #tpu.memory_space<vmem>>, vector<1x128xf32>
    %100 = vector.broadcast %99 : vector<1x128xf32> to vector<32x128xf32>
    %101 = arith.mulf %98, %100 : vector<32x128xf32>
    %102 = arith.addf %97, %101 : vector<32x128xf32>
    %103 = vector.extract_strided_slice %36 {offsets = [22, 0], sizes = [32, 128], strides = [1, 1]} : vector<64x128xf32> to vector<32x128xf32>
    %c13 = arith.constant 13 : index
    %c0_34 = arith.constant 0 : index
    %104 = vector.load %arg9[%c13, %c0_34] : memref<15x128xf32, #tpu.memory_space<vmem>>, vector<1x128xf32>
    %105 = vector.broadcast %104 : vector<1x128xf32> to vector<32x128xf32>
    %106 = arith.mulf %103, %105 : vector<32x128xf32>
    %107 = arith.addf %102, %106 : vector<32x128xf32>
    %108 = vector.extract_strided_slice %36 {offsets = [23, 0], sizes = [32, 128], strides = [1, 1]} : vector<64x128xf32> to vector<32x128xf32>
    %c14 = arith.constant 14 : index
    %c0_35 = arith.constant 0 : index
    %109 = vector.load %arg9[%c14, %c0_35] : memref<15x128xf32, #tpu.memory_space<vmem>>, vector<1x128xf32>
    %110 = vector.broadcast %109 : vector<1x128xf32> to vector<32x128xf32>
    %111 = arith.mulf %108, %110 : vector<32x128xf32>
    %112 = arith.addf %107, %111 : vector<32x128xf32>
    %c0_36 = arith.constant 0 : index
    %c0_37 = arith.constant 0 : index
    %113 = vector.load %arg10[%c0_36, %c0_37] : memref<1x128xf32, #tpu.memory_space<vmem>>, vector<1x128xf32>
    %114 = vector.broadcast %113 : vector<1x128xf32> to vector<32x128xf32>
    %115 = arith.addf %112, %114 : vector<32x128xf32>
    %116 = arith.negf %115 : vector<32x128xf32>
    %117 = math.exp %116 : vector<32x128xf32>
    %cst_38 = arith.constant 1.000000e+00 : f32
    %118 = vector.broadcast %cst_38 : f32 to vector<32x128xf32>
    %119 = arith.addf %118, %117 : vector<32x128xf32>
    %120 = arith.divf %118, %119 : vector<32x128xf32>
    %121 = arith.mulf %115, %120 : vector<32x128xf32>
    %122 = arith.truncf %121 : vector<32x128xf32> to vector<32x128xbf16>
    %c0_39 = arith.constant 0 : index
    %c0_40 = arith.constant 0 : index
    %123 = vector.load %arg11[%c0_39, %c0_40] : memref<128x128xbf16, #tpu.memory_space<vmem>>, vector<128x128xbf16>
    %cst_41 = arith.constant dense<0.000000e+00> : vector<32x128xf32>
    %124 = tpu.matmul %122, %123, %cst_41 {dimension_numbers = #tpu.dot_dimension_numbers<[1], [0], [0], [1], [0, 0, 1, 1], [], []>} : vector<32x128xbf16>, vector<128x128xbf16>, vector<32x128xf32> -> vector<32x128xf32>
    %c0_42 = arith.constant 0 : index
    %c0_43 = arith.constant 0 : index
    %125 = vector.load %arg12[%c0_42, %c0_43] : memref<1x128xf32, #tpu.memory_space<vmem>>, vector<1x128xf32>
    %126 = vector.broadcast %125 : vector<1x128xf32> to vector<32x128xf32>
    %127 = arith.addf %124, %126 : vector<32x128xf32>
    %c0_44 = arith.constant 0 : index
    %c0_45 = arith.constant 0 : index
    %c0_46 = arith.constant 0 : index
    %128 = vector.load %arg13[%c0_44, %c0_45, %c0_46] : memref<1x32x128xf32, #tpu.memory_space<vmem>>, vector<1x32x128xf32>
    %129 = vector.shape_cast %128 : vector<1x32x128xf32> to vector<32x128xf32>
    %130 = vector.shape_cast %127 : vector<32x128xf32> to vector<1x32x128xf32>
    tpu.vector_store %arg13[%c0_44, %c0_45, %c0_46], %130 {strides = array<i32>} : memref<1x32x128xf32, #tpu.memory_space<vmem>>, vector<1x32x128xf32>,
    return
  }
  func.func @transform_0(%arg0: i32, %arg1: i32) -> (i32, i32, i32) {
    %c2_i32 = arith.constant 2 : i32
    %0 = arith.muli %arg1, %c2_i32 : i32
    %c1_i32 = arith.constant 1 : i32
    %1 = arith.subi %0, %c1_i32 : i32
    %c0_i32 = arith.constant 0 : i32
    %2 = arith.maxsi %1, %c0_i32 : i32
    %c0_i32_0 = arith.constant 0 : i32
    %c0_i32_1 = arith.constant 0 : i32
    return %arg0, %2, %c0_i32_0 : i32, i32, i32
  }
  func.func @transform_1(%arg0: i32, %arg1: i32) -> (i32, i32, i32) {
    %c0_i32 = arith.constant 0 : i32
    %c0_i32_0 = arith.constant 0 : i32
    return %arg0, %arg1, %c0_i32 : i32, i32, i32
  }
  func.func @transform_2(%arg0: i32, %arg1: i32) -> (i32, i32, i32) {
    %c1_i32 = arith.constant 1 : i32
    %0 = arith.addi %arg1, %c1_i32 : i32
    %c2_i32 = arith.constant 2 : i32
    %1 = arith.muli %0, %c2_i32 : i32
    %c5_i32 = arith.constant 5 : i32
    %2 = arith.minsi %1, %c5_i32 : i32
    %c0_i32 = arith.constant 0 : i32
    %c0_i32_0 = arith.constant 0 : i32
    return %arg0, %2, %c0_i32 : i32, i32, i32
  }
  func.func @transform_3(%arg0: i32, %arg1: i32) -> (i32, i32) {
    %c0_i32 = arith.constant 0 : i32
    %c0_i32_0 = arith.constant 0 : i32
    %c0_i32_1 = arith.constant 0 : i32
    return %c0_i32, %c0_i32_0 : i32, i32
  }
  func.func @transform_4(%arg0: i32, %arg1: i32) -> (i32, i32) {
    %c0_i32 = arith.constant 0 : i32
    %c0_i32_0 = arith.constant 0 : i32
    %c0_i32_1 = arith.constant 0 : i32
    return %c0_i32, %c0_i32_0 : i32, i32
  }
  func.func @transform_5(%arg0: i32, %arg1: i32) -> (i32, i32) {
    %c0_i32 = arith.constant 0 : i32
    %c0_i32_0 = arith.constant 0 : i32
    %c0_i32_1 = arith.constant 0 : i32
    return %c0_i32, %c0_i32_0 : i32, i32
  }
  func.func @transform_6(%arg0: i32, %arg1: i32) -> (i32, i32) {
    %c0_i32 = arith.constant 0 : i32
    %c0_i32_0 = arith.constant 0 : i32
    %c0_i32_1 = arith.constant 0 : i32
    return %c0_i32, %c0_i32_0 : i32, i32
  }
  func.func @transform_7(%arg0: i32, %arg1: i32) -> (i32, i32) {
    %c0_i32 = arith.constant 0 : i32
    %c0_i32_0 = arith.constant 0 : i32
    %c0_i32_1 = arith.constant 0 : i32
    return %c0_i32, %c0_i32_0 : i32, i32
  }
  func.func @transform_8(%arg0: i32, %arg1: i32) -> (i32, i32) {
    %c0_i32 = arith.constant 0 : i32
    %c0_i32_0 = arith.constant 0 : i32
    %c0_i32_1 = arith.constant 0 : i32
    return %c0_i32, %c0_i32_0 : i32, i32
  }
  func.func @transform_9(%arg0: i32, %arg1: i32) -> (i32, i32) {
    %c0_i32 = arith.constant 0 : i32
    %c0_i32_0 = arith.constant 0 : i32
    %c0_i32_1 = arith.constant 0 : i32
    return %c0_i32, %c0_i32_0 : i32, i32
  }
  func.func @transform_10(%arg0: i32, %arg1: i32) -> (i32, i32) {
    %c0_i32 = arith.constant 0 : i32
    %c0_i32_0 = arith.constant 0 : i32
    %c0_i32_1 = arith.constant 0 : i32
    return %c0_i32, %c0_i32_0 : i32, i32
  }
  func.func @transform_11(%arg0: i32, %arg1: i32) -> (i32, i32, i32) {
    %c0_i32 = arith.constant 0 : i32
    %c0_i32_0 = arith.constant 0 : i32
    return %arg0, %arg1, %c0_i32 : i32, i32, i32
  }
}

</mosaic_0001>

<llo_original>
// kernel: tpu_custom_call.1
$region0: #{tpu_custom_call.1}
  #allocation0 [shape = 'u32[]', space=smem, size = 0x4, offset = 0x4, fixed_abs, tag = 'smem constant byte address 0x4 - core index']
  #allocation1 [shape = 'u32[72,128]{1,0:T(1,128)}', space=vmem, size = 0x9000, scoped, tag = 'internal scratch']
  %s0 = inlined_call_operand.hbm [shape: bf16[2,96,128], index: 0, kind: input, shape index: {}]
  %s1 = inlined_call_operand.hbm [shape: bf16[2,96,128], index: 1, kind: input, shape index: {}]
  %s2 = inlined_call_operand.hbm [shape: bf16[2,96,128], index: 2, kind: input, shape index: {}]
  %s3 = inlined_call_operand.hbm [shape: bf16[128,128], index: 3, kind: input, shape index: {}]
  %s4 = inlined_call_operand.hbm [shape: bf16[128,128], index: 4, kind: input, shape index: {}]
  %s5 = inlined_call_operand.vmem [shape: f32[1,128], index: 5, kind: input, shape index: {}]
  %s6 = inlined_call_operand.vmem [shape: f32[1,128], index: 6, kind: input, shape index: {}]
  %s7 = inlined_call_operand.hbm [shape: f32[15,128], index: 7, kind: input, shape index: {}]
  %s8 = inlined_call_operand.vmem [shape: f32[1,128], index: 8, kind: input, shape index: {}]
  %s9 = inlined_call_operand.hbm [shape: bf16[128,128], index: 9, kind: input, shape index: {}]
  %s10 = inlined_call_operand.vmem [shape: f32[1,128], index: 10, kind: input, shape index: {}]
  %s11 = inlined_call_operand.hbm [shape: f32[2,96,128], index: 11, kind: output, shape index: {}]
  %s12 = sld [smem:[#allocation0]]
  $region105: #{tpu_custom_call.1} parent=0
    _
  %s14 = ssub.s32 1, %s12
  %s15 = scalar_select 0, %s14, %s12
  $region1: #{tpu_custom_call.1} parent=0
    #allocation2 [shape = 'u8[8192]{0}', space=vmem, size = 0x2000, scoped, tag = 'input window, operand 0']
    #allocation3 [shape = 's32[2]{0}', space=sflag, size = 0x8, scoped, tag = 'scoped memory for tpu_custom_call.1']
    #allocation4 [shape = 's32[2]{0}', space=sflag, size = 0x8, scoped, tag = 'scoped memory for tpu_custom_call.1']
    #allocation5 [shape = 'u8[16384]{0}', space=vmem, size = 0x4000, scoped, tag = 'input window, operand 1']
    #allocation6 [shape = 's32[2]{0}', space=sflag, size = 0x8, scoped, tag = 'scoped memory for tpu_custom_call.1']
    #allocation7 [shape = 'u8[8192]{0}', space=vmem, size = 0x2000, scoped, tag = 'input window, operand 2']
    #allocation8 [shape = 'u8[32768]{0}', space=vmem, size = 0x8000, scoped, tag = 'input window, operand 3, single buffered']
    #allocation9 [shape = 's32[1]{0}', space=sflag, size = 0x4, scoped, tag = 'scoped memory for tpu_custom_call.1']
    #allocation10 [shape = 'u8[32768]{0}', space=vmem, size = 0x8000, scoped, tag = 'input window, operand 4, single buffered']
    #allocation11 [shape = 'u8[8192]{0}', space=vmem, size = 0x2000, scoped, tag = 'input window, operand 7, single buffered']
    #allocation12 [shape = 's32[1]{0}', space=sflag, size = 0x4, scoped, tag = 'scoped memory for tpu_custom_call.1']
    #allocation13 [shape = 'u8[32768]{0}', space=vmem, size = 0x8000, scoped, tag = 'input window, operand 9, single buffered']
    #allocation14 [shape = 'u8[32768]{0}', space=vmem, size = 0x8000, scoped, tag = 'output window, operand 0']
    %16 = vsyncpa [#allocation3], 0
    %s17 = scalar_lea.sflag [#allocation3], 1
    %18 = vsyncpa %s17, 0
    %19 = vsyncpa [#allocation6], 0
    %s20 = scalar_lea.sflag [#allocation6], 1
    %21 = vsyncpa %s20, 0
    %22 = vsyncpa [#allocation9], 0
    %23 = vsyncpa [#allocation12], 0
    %24 = vsyncpa [#allocation4], 0
    %s25 = scalar_lea.sflag [#allocation4], 1
    %26 = vsyncpa %s25, 0
    loop: start=0, step=1, limit=8
    $region2: #{tpu_custom_call.1} parent=1 // loop_pre_header
      _
    $region3: #{tpu_custom_call.1} parent=1 // loop_header
      %s28 = sphi 0, %s32
      %p29 = scmp.ge.s32.totalorder %s28, 8
      %s35 = sphi 0, %s47
      %s36 = sphi 0, %s43
      %s37 = sphi 0, %s35
      %s38 = sphi 0, %s36
      %s39 = sphi 0, %s37
      %s40 = sphi 0, %s38
      %s60 = sphi 0, %s62
      %s63 = sphi 0, %s60
      %s64 = sphi 0, %s63
      %s80 = sphi 0, %s64
      %s88 = sphi 0, %s90
      %s91 = sphi 0, %s88
      %s92 = sphi 0, %s91
      %s108 = sphi 0, %s92
      %s124 = sphi 0, %s126
      %s127 = sphi 0, %s124
      %s128 = sphi 0, %s127
      %s144 = sphi 0, %s128
      %s148 = sphi 0, %s148
      %s150 = sphi 0, %s148
      %s151 = sphi 0, %s150
      %s165 = sphi 0, %s151
      %s169 = sphi 0, %s169
      %s171 = sphi 0, %s169
      %s172 = sphi 0, %s171
      %s186 = sphi 0, %s172
      %s190 = sphi 0, %s190
      %s192 = sphi 0, %s190
      %s193 = sphi 0, %s192
      %s207 = sphi 0, %s193
      %s211 = sphi 0, %s211
      %s213 = sphi 0, %s211
      %s214 = sphi 0, %s213
      %s228 = sphi 0, %s214
      %s232 = sphi 0, %s232
      %s234 = sphi 0, %s232
      %s235 = sphi 0, %s234
      %s249 = sphi 0, %s235
      %s253 = sphi 0, %s253
      %s255 = sphi 0, %s253
      %s256 = sphi 0, %s255
      %s270 = sphi 0, %s256
      %s274 = sphi 0, %s274
      %s276 = sphi 0, %s274
      %s277 = sphi 0, %s276
      %s291 = sphi 0, %s277
      %s295 = sphi 0, %s295
      %s297 = sphi 0, %s295
      %s298 = sphi 0, %s297
      %s312 = sphi 0, %s298
      %s320 = sphi 0, %s322
      %s323 = sphi 0, %s320
      %s324 = sphi 0, %s323
      %s340 = sphi 0, %s324
    $region4: #{tpu_custom_call.1} parent=1 // loop_header_branch
      %31 = sbr.rel (%p29) target = $region8
    $region5: #{tpu_custom_call.1} parent=1 // loop_body
      %s33 = ssub.s32 %s28, 1
      %s34 = ssub.s32 %s28, 2
      %s41 = sadd.s32 1, %s36
      %p42 = scmp.ge.s32.totalorder %s41, 3
      %s43 = scalar_select %p42, 0, %s41
      %s44 = sadd.s32 1, %s35
      %s45 = scalar_select %p42, %s44, %s35
      %p46 = scmp.ge.s32.totalorder %s45, 2
      %s47 = scalar_select %p46, 0, %s45
      %s48 = smul.u32 %s36, 2
      %s49 = ssub.s32 %s48, 1
      %p50 = scmp.gt.s32.totalorder %s49, 0
      %s51 = scalar_select %p50, %s49, 0
      %s52 = smul.u32 %s43, 2
      %s53 = ssub.s32 %s52, 1
      %p54 = scmp.gt.s32.totalorder %s53, 0
      %s55 = scalar_select %p54, %s53, 0
      %s56 = ssub.s32 %s35, %s47
      %s57 = ssub.s32 %s51, %s55
      %s58 = sor.u32 %s56, %s57
      %p59 = scmp.eq.s32.totalorder %s58, 0
      %s61 = sadd.s32 %s60, 1
      %s62 = scalar_select %p59, %s60, %s61
      %p65 = pneg %p59
      %p66 = scmp.eq.s32.totalorder %s28, 5
      %p67 = por %p65, %p66
      %p68 = scmp.ne.s32.totalorder %s60, %s63
      %p69 = scmp.eq.s32.totalorder %s28, 0
      %p70 = por %p68, %p69
      %p71 = scmp.ne.s32.totalorder %s60, %s63
      %p72 = scmp.eq.s32.totalorder %s33, 5
      %p73 = por %p71, %p72
      %p74 = scmp.ne.s32.totalorder %s63, %s64
      %p75 = scmp.eq.s32.totalorder %s33, 0
      %p76 = por %p74, %p75
      %p77 = scmp.ne.s32.totalorder %s63, %s64
      %p78 = scmp.eq.s32.totalorder %s34, 5
      %p79 = por %p77, %p78
      %p81 = scmp.ne.s32.totalorder %s64, %s80
      %p82 = scmp.eq.s32.totalorder %s34, 0
      %p83 = por %p81, %p82
      %s84 = ssub.s32 %s35, %s47
      %s85 = ssub.s32 %s36, %s43
      %s86 = sor.u32 %s84, %s85
      %p87 = scmp.eq.s32.totalorder %s86, 0
      %s89 = sadd.s32 %s88, 1
      %s90 = scalar_select %p87, %s88, %s89
      %p93 = pneg %p87
      %p94 = scmp.eq.s32.totalorder %s28, 5
      %p95 = por %p93, %p94
      %p96 = scmp.ne.s32.totalorder %s88, %s91
      %p97 = scmp.eq.s32.totalorder %s28, 0
      %p98 = por %p96, %p97
      %p99 = scmp.ne.s32.totalorder %s88, %s91
      %p100 = scmp.eq.s32.totalorder %s33, 5
      %p101 = por %p99, %p100
      %p102 = scmp.ne.s32.totalorder %s91, %s92
      %p103 = scmp.eq.s32.totalorder %s33, 0
      %p104 = por %p102, %p103
      %p105 = scmp.ne.s32.totalorder %s91, %s92
      %p106 = scmp.eq.s32.totalorder %s34, 5
      %p107 = por %p105, %p106
      %p109 = scmp.ne.s32.totalorder %s92, %s108
      %p110 = scmp.eq.s32.totalorder %s34, 0
      %p111 = por %p109, %p110
      %s112 = sadd.s32 %s36, 1
      %s113 = smul.u32 %s112, 2
      %p114 = scmp.lt.s32.totalorder %s113, 5
      %s115 = scalar_select %p114, %s113, 5
      %s116 = sadd.s32 %s43, 1
      %s117 = smul.u32 %s116, 2
      %p118 = scmp.lt.s32.totalorder %s117, 5
      %s119 = scalar_select %p118, %s117, 5
      %s120 = ssub.s32 %s35, %s47
      %s121 = ssub.s32 %s115, %s119
      %s122 = sor.u32 %s120, %s121
      %p123 = scmp.eq.s32.totalorder %s122, 0
      %s125 = sadd.s32 %s124, 1
      %s126 = scalar_select %p123, %s124, %s125
      %p129 = pneg %p123
      %p130 = scmp.eq.s32.totalorder %s28, 5
      %p131 = por %p129, %p130
      %p132 = scmp.ne.s32.totalorder %s124, %s127
      %p133 = scmp.eq.s32.totalorder %s28, 0
      %p134 = por %p132, %p133
      %p135 = scmp.ne.s32.totalorder %s124, %s127
      %p136 = scmp.eq.s32.totalorder %s33, 5
      %p137 = por %p135, %p136
      %p138 = scmp.ne.s32.totalorder %s127, %s128
      %p139 = scmp.eq.s32.totalorder %s33, 0
      %p140 = por %p138, %p139
      %p141 = scmp.ne.s32.totalorder %s127, %s128
      %p142 = scmp.eq.s32.totalorder %s34, 5
      %p143 = por %p141, %p142
      %p145 = scmp.ne.s32.totalorder %s128, %s144
      %p146 = scmp.eq.s32.totalorder %s34, 0
      %p147 = por %p145, %p146
      %s149 = sadd.s32 %s148, 1
      %p152 = scmp.eq.s32.totalorder %s28, 5
      %p153 = scmp.ne.s32.totalorder %s148, %s150
      %p154 = scmp.eq.s32.totalorder %s28, 0
      %p155 = por %p153, %p154
      %p156 = scmp.ne.s32.totalorder %s148, %s150
      %p157 = scmp.eq.s32.totalorder %s33, 5
      %p158 = por %p156, %p157
      %p159 = scmp.ne.s32.totalorder %s150, %s151
      %p160 = scmp.eq.s32.totalorder %s33, 0
      %p161 = por %p159, %p160
      %p162 = scmp.ne.s32.totalorder %s150, %s151
      %p163 = scmp.eq.s32.totalorder %s34, 5
      %p164 = por %p162, %p163
      %p166 = scmp.ne.s32.totalorder %s151, %s165
      %p167 = scmp.eq.s32.totalorder %s34, 0
      %p168 = por %p166, %p167
      %s170 = sadd.s32 %s169, 1
      %p173 = scmp.eq.s32.totalorder %s28, 5
      %p174 = scmp.ne.s32.totalorder %s169, %s171
      %p175 = scmp.eq.s32.totalorder %s28, 0
      %p176 = por %p174, %p175
      %p177 = scmp.ne.s32.totalorder %s169, %s171
      %p178 = scmp.eq.s32.totalorder %s33, 5
      %p179 = por %p177, %p178
      %p180 = scmp.ne.s32.totalorder %s171, %s172
      %p181 = scmp.eq.s32.totalorder %s33, 0
      %p182 = por %p180, %p181
      %p183 = scmp.ne.s32.totalorder %s171, %s172
      %p184 = scmp.eq.s32.totalorder %s34, 5
      %p185 = por %p183, %p184
      %p187 = scmp.ne.s32.totalorder %s172, %s186
      %p188 = scmp.eq.s32.totalorder %s34, 0
      %p189 = por %p187, %p188
      %s191 = sadd.s32 %s190, 1
      %p194 = scmp.eq.s32.totalorder %s28, 5
      %p195 = scmp.ne.s32.totalorder %s190, %s192
      %p196 = scmp.eq.s32.totalorder %s28, 0
      %p197 = por %p195, %p196
      %p198 = scmp.ne.s32.totalorder %s190, %s192
      %p199 = scmp.eq.s32.totalorder %s33, 5
      %p200 = por %p198, %p199
      %p201 = scmp.ne.s32.totalorder %s192, %s193
      %p202 = scmp.eq.s32.totalorder %s33, 0
      %p203 = por %p201, %p202
      %p204 = scmp.ne.s32.totalorder %s192, %s193
      %p205 = scmp.eq.s32.totalorder %s34, 5
      %p206 = por %p204, %p205
      %p208 = scmp.ne.s32.totalorder %s193, %s207
      %p209 = scmp.eq.s32.totalorder %s34, 0
      %p210 = por %p208, %p209
      %s212 = sadd.s32 %s211, 1
      %p215 = scmp.eq.s32.totalorder %s28, 5
      %p216 = scmp.ne.s32.totalorder %s211, %s213
      %p217 = scmp.eq.s32.totalorder %s28, 0
      %p218 = por %p216, %p217
      %p219 = scmp.ne.s32.totalorder %s211, %s213
      %p220 = scmp.eq.s32.totalorder %s33, 5
      %p221 = por %p219, %p220
      %p222 = scmp.ne.s32.totalorder %s213, %s214
      %p223 = scmp.eq.s32.totalorder %s33, 0
      %p224 = por %p222, %p223
      %p225 = scmp.ne.s32.totalorder %s213, %s214
      %p226 = scmp.eq.s32.totalorder %s34, 5
      %p227 = por %p225, %p226
      %p229 = scmp.ne.s32.totalorder %s214, %s228
      %p230 = scmp.eq.s32.totalorder %s34, 0
      %p231 = por %p229, %p230
      %s233 = sadd.s32 %s232, 1
      %p236 = scmp.eq.s32.totalorder %s28, 5
      %p237 = scmp.ne.s32.totalorder %s232, %s234
      %p238 = scmp.eq.s32.totalorder %s28, 0
      %p239 = por %p237, %p238
      %p240 = scmp.ne.s32.totalorder %s232, %s234
      %p241 = scmp.eq.s32.totalorder %s33, 5
      %p242 = por %p240, %p241
      %p243 = scmp.ne.s32.totalorder %s234, %s235
      %p244 = scmp.eq.s32.totalorder %s33, 0
      %p245 = por %p243, %p244
      %p246 = scmp.ne.s32.totalorder %s234, %s235
      %p247 = scmp.eq.s32.totalorder %s34, 5
      %p248 = por %p246, %p247
      %p250 = scmp.ne.s32.totalorder %s235, %s249
      %p251 = scmp.eq.s32.totalorder %s34, 0
      %p252 = por %p250, %p251
      %s254 = sadd.s32 %s253, 1
      %p257 = scmp.eq.s32.totalorder %s28, 5
      %p258 = scmp.ne.s32.totalorder %s253, %s255
      %p259 = scmp.eq.s32.totalorder %s28, 0
      %p260 = por %p258, %p259
      %p261 = scmp.ne.s32.totalorder %s253, %s255
      %p262 = scmp.eq.s32.totalorder %s33, 5
      %p263 = por %p261, %p262
      %p264 = scmp.ne.s32.totalorder %s255, %s256
      %p265 = scmp.eq.s32.totalorder %s33, 0
      %p266 = por %p264, %p265
      %p267 = scmp.ne.s32.totalorder %s255, %s256
      %p268 = scmp.eq.s32.totalorder %s34, 5
      %p269 = por %p267, %p268
      %p271 = scmp.ne.s32.totalorder %s256, %s270
      %p272 = scmp.eq.s32.totalorder %s34, 0
      %p273 = por %p271, %p272
      %s275 = sadd.s32 %s274, 1
      %p278 = scmp.eq.s32.totalorder %s28, 5
      %p279 = scmp.ne.s32.totalorder %s274, %s276
      %p280 = scmp.eq.s32.totalorder %s28, 0
      %p281 = por %p279, %p280
      %p282 = scmp.ne.s32.totalorder %s274, %s276
      %p283 = scmp.eq.s32.totalorder %s33, 5
      %p284 = por %p282, %p283
      %p285 = scmp.ne.s32.totalorder %s276, %s277
      %p286 = scmp.eq.s32.totalorder %s33, 0
      %p287 = por %p285, %p286
      %p288 = scmp.ne.s32.totalorder %s276, %s277
      %p289 = scmp.eq.s32.totalorder %s34, 5
      %p290 = por %p288, %p289
      %p292 = scmp.ne.s32.totalorder %s277, %s291
      %p293 = scmp.eq.s32.totalorder %s34, 0
      %p294 = por %p292, %p293
      %s296 = sadd.s32 %s295, 1
      %p299 = scmp.eq.s32.totalorder %s28, 5
      %p300 = scmp.ne.s32.totalorder %s295, %s297
      %p301 = scmp.eq.s32.totalorder %s28, 0
      %p302 = por %p300, %p301
      %p303 = scmp.ne.s32.totalorder %s295, %s297
      %p304 = scmp.eq.s32.totalorder %s33, 5
      %p305 = por %p303, %p304
      %p306 = scmp.ne.s32.totalorder %s297, %s298
      %p307 = scmp.eq.s32.totalorder %s33, 0
      %p308 = por %p306, %p307
      %p309 = scmp.ne.s32.totalorder %s297, %s298
      %p310 = scmp.eq.s32.totalorder %s34, 5
      %p311 = por %p309, %p310
      %p313 = scmp.ne.s32.totalorder %s298, %s312
      %p314 = scmp.eq.s32.totalorder %s34, 0
      %p315 = por %p313, %p314
      %s316 = ssub.s32 %s35, %s47
      %s317 = ssub.s32 %s36, %s43
      %s318 = sor.u32 %s316, %s317
      %p319 = scmp.eq.s32.totalorder %s318, 0
      %s321 = sadd.s32 %s320, 1
      %s322 = scalar_select %p319, %s320, %s321
      %p325 = pneg %p319
      %p326 = scmp.eq.s32.totalorder %s28, 5
      %p327 = por %p325, %p326
      %p328 = scmp.ne.s32.totalorder %s320, %s323
      %p329 = scmp.eq.s32.totalorder %s28, 0
      %p330 = por %p328, %p329
      %p331 = scmp.ne.s32.totalorder %s320, %s323
      %p332 = scmp.eq.s32.totalorder %s33, 5
      %p333 = por %p331, %p332
      %p334 = scmp.ne.s32.totalorder %s323, %s324
      %p335 = scmp.eq.s32.totalorder %s33, 0
      %p336 = por %p334, %p335
      %p337 = scmp.ne.s32.totalorder %s323, %s324
      %p338 = scmp.eq.s32.totalorder %s34, 5
      %p339 = por %p337, %p338
      %p341 = scmp.ne.s32.totalorder %s324, %s340
      %p342 = scmp.eq.s32.totalorder %s34, 0
      %p343 = por %p341, %p342
      %p344 = scmp.le.s32.totalorder 1, %s28
      %p345 = scmp.lt.s32.totalorder %s28, 7
      %p346 = pnand %p344, %p345
      %p347 = pneg %p346
      // Predicated region
      $region9: #{tpu_custom_call.1} parent=5 // pred_check
        _
      $region10: #{tpu_custom_call.1} parent=5 // pred_check_branch
        %349 = sbr.rel (%p346) target = $region12
      $region11: #{tpu_custom_call.1} parent=5 // pred_region
        %s350 = ssub.s32 %s28, 1
        // Predicated region
        $region13: #{tpu_custom_call.1} parent=11 // pred_check
          %p351 = pneg %p161
        $region14: #{tpu_custom_call.1} parent=11 // pred_check_branch
          %353 = sbr.rel (%p351) target = $region16
        $region15: #{tpu_custom_call.1} parent=11 // pred_region
          %355 = vsyncadd [#allocation9], 0
          %s356 = sshll.u32 %s3, 4
          %s357 = int_to_ptr.hbm [resolvable:$true] %s356
          %s358 = sshll.u32 [#allocation8], 4
          %s359 = int_to_ptr.vmem [resolvable:$true] %s358
          %364 = dma.hbm_to_vmem [thread:$0]  %s357, 1024, %s359, [#allocation9], 64, 64, 4
        $region16: #{tpu_custom_call.1} parent=11 // pred_fallthru
          _
        // Predicated region
        $region17: #{tpu_custom_call.1} parent=11 // pred_check
          %p365 = pneg %p182
        $region18: #{tpu_custom_call.1} parent=11 // pred_check_branch
          %367 = sbr.rel (%p365) target = $region20
        $region19: #{tpu_custom_call.1} parent=11 // pred_region
          %369 = vsyncadd [#allocation9], 0
          %s370 = sshll.u32 %s4, 4
          %s371 = int_to_ptr.hbm [resolvable:$true] %s370
          %s372 = sshll.u32 [#allocation10], 4
          %s373 = int_to_ptr.vmem [resolvable:$true] %s372
          %378 = dma.hbm_to_vmem [thread:$0]  %s371, 1024, %s373, [#allocation9], 64, 64, 4
        $region20: #{tpu_custom_call.1} parent=11 // pred_fallthru
          _
        // Predicated region
        $region21: #{tpu_custom_call.1} parent=11 // pred_check
          %p379 = pneg %p203
        $region22: #{tpu_custom_call.1} parent=11 // pred_check_branch
          %381 = sbr.rel (%p379) target = $region24
        $region23: #{tpu_custom_call.1} parent=11 // pred_region
          _
        $region24: #{tpu_custom_call.1} parent=11 // pred_fallthru
          _
        // Predicated region
        $region25: #{tpu_custom_call.1} parent=11 // pred_check
          %p382 = pneg %p224
        $region26: #{tpu_custom_call.1} parent=11 // pred_check_branch
          %384 = sbr.rel (%p382) target = $region28
        $region27: #{tpu_custom_call.1} parent=11 // pred_region
          _
        $region28: #{tpu_custom_call.1} parent=11 // pred_fallthru
          _
        // Predicated region
        $region29: #{tpu_custom_call.1} parent=11 // pred_check
          %p385 = pneg %p245
        $region30: #{tpu_custom_call.1} parent=11 // pred_check_branch
          %387 = sbr.rel (%p385) target = $region32
        $region31: #{tpu_custom_call.1} parent=11 // pred_region
          %389 = vsyncadd [#allocation12], 0
          %s390 = sshll.u32 %s7, 4
          %s391 = int_to_ptr.hbm [resolvable:$true] %s390
          %s392 = sshll.u32 [#allocation11], 4
          %s393 = int_to_ptr.vmem [resolvable:$true] %s392
          %398 = dma.hbm_to_vmem [thread:$0]  %s391, 256, %s393, [#allocation12], 128, 128, 8
        $region32: #{tpu_custom_call.1} parent=11 // pred_fallthru
          _
        // Predicated region
        $region33: #{tpu_custom_call.1} parent=11 // pred_check
          %p399 = pneg %p266
        $region34: #{tpu_custom_call.1} parent=11 // pred_check_branch
          %401 = sbr.rel (%p399) target = $region36
        $region35: #{tpu_custom_call.1} parent=11 // pred_region
          _
        $region36: #{tpu_custom_call.1} parent=11 // pred_fallthru
          _
        // Predicated region
        $region37: #{tpu_custom_call.1} parent=11 // pred_check
          %p402 = pneg %p287
        $region38: #{tpu_custom_call.1} parent=11 // pred_check_branch
          %404 = sbr.rel (%p402) target = $region40
        $region39: #{tpu_custom_call.1} parent=11 // pred_region
          %406 = vsyncadd [#allocation12], 0
          %s407 = sshll.u32 %s9, 4
          %s408 = int_to_ptr.hbm [resolvable:$true] %s407
          %s409 = sshll.u32 [#allocation13], 4
          %s410 = int_to_ptr.vmem [resolvable:$true] %s409
          %415 = dma.hbm_to_vmem [thread:$0]  %s408, 1024, %s410, [#allocation12], 64, 64, 4
        $region40: #{tpu_custom_call.1} parent=11 // pred_fallthru
          _
        // Predicated region
        $region41: #{tpu_custom_call.1} parent=11 // pred_check
          %p416 = pneg %p308
        $region42: #{tpu_custom_call.1} parent=11 // pred_check_branch
          %418 = sbr.rel (%p416) target = $region44
        $region43: #{tpu_custom_call.1} parent=11 // pred_region
          _
        $region44: #{tpu_custom_call.1} parent=11 // pred_fallthru
          _
      $region12: #{tpu_custom_call.1} parent=5 // pred_fallthru
        _
      %p419 = scmp.lt.s32.totalorder %s28, 6
      // Predicated region
      $region45: #{tpu_custom_call.1} parent=5 // pred_check
        %p420 = pneg %p419
      $region46: #{tpu_custom_call.1} parent=5 // pred_check_branch
        %422 = sbr.rel (%p420) target = $region48
      $region47: #{tpu_custom_call.1} parent=5 // pred_region
        // Predicated region
        $region49: #{tpu_custom_call.1} parent=47 // pred_check
          %p423 = pneg %p70
        $region50: #{tpu_custom_call.1} parent=47 // pred_check_branch
          %425 = sbr.rel (%p423) target = $region52
        $region51: #{tpu_custom_call.1} parent=47 // pred_region
          %s426 = sand.u32 %s60, 1
          %s427 = scalar_lea.sflag [#allocation3], %s426
          %s428 = sand.u32 %s60, 1
          %s429 = smul.addr %s428, 8
          %s430 = scalar_lea.vmem [#allocation2], %s429
          %s431 = smul.u32 %s36, 2
          %s432 = ssub.s32 %s431, 1
          %p433 = scmp.gt.s32.totalorder %s432, 0
          %s434 = scalar_select %p433, %s432, 0
          %s435 = smul.u32 2, %s434
          %437 = vsyncadd %s427, 0
          %s438 = smul.addr %s35, 12
          %s439 = sadd.s32 %s435, %s438
          %s440 = smul.addr %s439, 4
          %s441 = scalar_lea.hbm %s0, %s440
          %s442 = sshll.u32 %s441, 4
          %s443 = int_to_ptr.hbm [resolvable:$true] %s442
          %s444 = sshll.u32 %s430, 4
          %s445 = int_to_ptr.vmem [resolvable:$true] %s444
          %450 = dma.hbm_to_vmem [thread:$0]  %s443, 128, %s445, %s427, 64, 64, 4
        $region52: #{tpu_custom_call.1} parent=47 // pred_fallthru
          _
        // Predicated region
        $region53: #{tpu_custom_call.1} parent=47 // pred_check
          %p451 = pneg %p98
        $region54: #{tpu_custom_call.1} parent=47 // pred_check_branch
          %453 = sbr.rel (%p451) target = $region56
        $region55: #{tpu_custom_call.1} parent=47 // pred_region
          %s454 = sand.u32 %s28, 1
          %s455 = scalar_lea.sflag [#allocation6], %s454
          %s456 = sand.u32 %s88, 1
          %s457 = smul.addr %s456, 16
          %s458 = scalar_lea.vmem [#allocation5], %s457
          %s459 = smul.u32 4, %s36
          %461 = vsyncadd %s455, 0
          %s462 = smul.addr %s35, 12
          %s463 = sadd.s32 %s459, %s462
          %s464 = smul.addr %s463, 4
          %s465 = scalar_lea.hbm %s1, %s464
          %s466 = sshll.u32 %s465, 4
          %s467 = int_to_ptr.hbm [resolvable:$true] %s466
          %s468 = sshll.u32 %s458, 4
          %s469 = int_to_ptr.vmem [resolvable:$true] %s468
          %474 = dma.hbm_to_vmem [thread:$0]  %s467, 256, %s469, %s455, 64, 64, 4
        $region56: #{tpu_custom_call.1} parent=47 // pred_fallthru
          _
        // Predicated region
        $region57: #{tpu_custom_call.1} parent=47 // pred_check
          %p475 = pneg %p134
        $region58: #{tpu_custom_call.1} parent=47 // pred_check_branch
          %477 = sbr.rel (%p475) target = $region60
        $region59: #{tpu_custom_call.1} parent=47 // pred_region
          %s478 = sand.u32 %s28, 1
          %s479 = scalar_lea.sflag [#allocation6], %s478
          %s480 = sand.u32 %s124, 1
          %s481 = smul.addr %s480, 8
          %s482 = scalar_lea.vmem [#allocation7], %s481
          %s483 = sadd.s32 %s36, 1
          %s484 = smul.u32 %s483, 2
          %p485 = scmp.lt.s32.totalorder %s484, 5
          %s486 = scalar_select %p485, %s484, 5
          %s487 = smul.u32 2, %s486
          %489 = vsyncadd %s479, 0
          %s490 = smul.addr %s35, 12
          %s491 = sadd.s32 %s487, %s490
          %s492 = smul.addr %s491, 4
          %s493 = scalar_lea.hbm %s2, %s492
          %s494 = sshll.u32 %s493, 4
          %s495 = int_to_ptr.hbm [resolvable:$true] %s494
          %s496 = sshll.u32 %s482, 4
          %s497 = int_to_ptr.vmem [resolvable:$true] %s496
          %502 = dma.hbm_to_vmem [thread:$0]  %s495, 128, %s497, %s479, 64, 64, 4
        $region60: #{tpu_custom_call.1} parent=47 // pred_fallthru
          _
      $region48: #{tpu_custom_call.1} parent=5 // pred_fallthru
        _
      %p503 = scmp.le.s32.totalorder 1, %s28
      %p504 = scmp.lt.s32.totalorder %s28, 7
      %p505 = pnand %p503, %p504
      %p506 = pneg %p505
      // Predicated region
      $region61: #{tpu_custom_call.1} parent=5 // pred_check
        _
      $region62: #{tpu_custom_call.1} parent=5 // pred_check_branch
        %508 = sbr.rel (%p505) target = $region64
      $region63: #{tpu_custom_call.1} parent=5 // pred_region
        %s509 = ssub.s32 %s28, 1
        %s510 = sand.u32 %s63, 1
        %s511 = scalar_lea.sflag [#allocation3], %s510
        %s512 = sand.u32 %s63, 1
        %s513 = smul.addr %s512, 8
        %s514 = scalar_lea.vmem [#allocation2], %s513
        // Predicated region
        $region65: #{tpu_custom_call.1} parent=63 // pred_check
          %p515 = pneg %p76
        $region66: #{tpu_custom_call.1} parent=63 // pred_check_branch
          %517 = sbr.rel (%p515) target = $region68
        $region67: #{tpu_custom_call.1} parent=63 // pred_region
          %519 = dma.done %s511, 128
        $region68: #{tpu_custom_call.1} parent=63 // pred_fallthru
          _
        %s520 = sand.u32 %s33, 1
        %s521 = scalar_lea.sflag [#allocation6], %s520
        %s522 = sand.u32 %s91, 1
        %s523 = smul.addr %s522, 16
        %s524 = scalar_lea.vmem [#allocation5], %s523
        // Predicated region
        $region69: #{tpu_custom_call.1} parent=63 // pred_check
          %p525 = pneg %p104
        $region70: #{tpu_custom_call.1} parent=63 // pred_check_branch
          %527 = sbr.rel (%p525) target = $region72
        $region71: #{tpu_custom_call.1} parent=63 // pred_region
          %529 = dma.done %s521, 256
        $region72: #{tpu_custom_call.1} parent=63 // pred_fallthru
          _
        %s530 = sand.u32 %s33, 1
        %s531 = scalar_lea.sflag [#allocation6], %s530
        %s532 = sand.u32 %s127, 1
        %s533 = smul.addr %s532, 8
        %s534 = scalar_lea.vmem [#allocation7], %s533
        // Predicated region
        $region73: #{tpu_custom_call.1} parent=63 // pred_check
          %p535 = pneg %p140
        $region74: #{tpu_custom_call.1} parent=63 // pred_check_branch
          %537 = sbr.rel (%p535) target = $region76
        $region75: #{tpu_custom_call.1} parent=63 // pred_region
          %539 = dma.done %s531, 128
        $region76: #{tpu_custom_call.1} parent=63 // pred_fallthru
          _
        // Predicated region
        $region77: #{tpu_custom_call.1} parent=63 // pred_check
          %p540 = pneg %p161
        $region78: #{tpu_custom_call.1} parent=63 // pred_check_branch
          %542 = sbr.rel (%p540) target = $region80
        $region79: #{tpu_custom_call.1} parent=63 // pred_region
          %544 = dma.done [#allocation9], 1024
        $region80: #{tpu_custom_call.1} parent=63 // pred_fallthru
          _
        // Predicated region
        $region81: #{tpu_custom_call.1} parent=63 // pred_check
          %p545 = pneg %p182
        $region82: #{tpu_custom_call.1} parent=63 // pred_check_branch
          %547 = sbr.rel (%p545) target = $region84
        $region83: #{tpu_custom_call.1} parent=63 // pred_region
          %549 = dma.done [#allocation9], 1024
        $region84: #{tpu_custom_call.1} parent=63 // pred_fallthru
          _
        // Predicated region
        $region85: #{tpu_custom_call.1} parent=63 // pred_check
          %p550 = pneg %p245
        $region86: #{tpu_custom_call.1} parent=63 // pred_check_branch
          %552 = sbr.rel (%p550) target = $region88
        $region87: #{tpu_custom_call.1} parent=63 // pred_region
          %554 = dma.done [#allocation12], 256
        $region88: #{tpu_custom_call.1} parent=63 // pred_fallthru
          _
        // Predicated region
        $region89: #{tpu_custom_call.1} parent=63 // pred_check
          %p555 = pneg %p287
        $region90: #{tpu_custom_call.1} parent=63 // pred_check_branch
          %557 = sbr.rel (%p555) target = $region92
        $region91: #{tpu_custom_call.1} parent=63 // pred_region
          %559 = dma.done [#allocation12], 1024
        $region92: #{tpu_custom_call.1} parent=63 // pred_fallthru
          _
        %s560 = sand.u32 %s63, 1
        %s561 = scalar_lea.sflag [#allocation3], %s560
        %s562 = sand.u32 %s63, 1
        %s563 = smul.addr %s562, 8
        %s564 = scalar_lea.vmem [#allocation2], %s563
        %p565 = pneg %p76
        %p566 = pneg %p73
        %s567 = sand.u32 %s33, 1
        %s568 = scalar_lea.sflag [#allocation6], %s567
        %s569 = sand.u32 %s91, 1
        %s570 = smul.addr %s569, 16
        %s571 = scalar_lea.vmem [#allocation5], %s570
        %p572 = pneg %p104
        %p573 = pneg %p101
        %s574 = sand.u32 %s33, 1
        %s575 = scalar_lea.sflag [#allocation6], %s574
        %s576 = sand.u32 %s127, 1
        %s577 = smul.addr %s576, 8
        %s578 = scalar_lea.vmem [#allocation7], %s577
        %p579 = pneg %p140
        %p580 = pneg %p137
        %p581 = pneg %p161
        %p582 = pneg %p158
        %p583 = pneg %p182
        %p584 = pneg %p179
        %p585 = pneg %p203
        %p586 = pneg %p200
        %p587 = pneg %p224
        %p588 = pneg %p221
        %p589 = pneg %p245
        %p590 = pneg %p242
        %p591 = pneg %p266
        %p592 = pneg %p263
        %p593 = pneg %p287
        %p594 = pneg %p284
        %p595 = pneg %p308
        %p596 = pneg %p305
        %p597 = pneg %p336
        %p598 = pneg %p333
        %s599 = sand.u32 %s323, 1
        %s600 = scalar_lea.sflag [#allocation4], %s599
        %s601 = sand.u32 %s323, 1
        %s602 = smul.addr %s601, 32
        %s603 = scalar_lea.vmem [#allocation14], %s602
        %s604 = smul.u32 %s38, 2
        %s605 = ssub.s32 %s604, 1
        %p606 = scmp.gt.s32.totalorder %s605, 0
        %s607 = scalar_select %p606, %s605, 0
        %s608 = smul.u32 2, %s607
        %s609 = smul.u32 4, %s38
        %s610 = sadd.s32 %s38, 1
        %s611 = smul.u32 %s610, 2
        %p612 = scmp.lt.s32.totalorder %s611, 5
        %s613 = scalar_select %p612, %s611, 5
        %s614 = smul.u32 2, %s613
        %s615 = smul.u32 4, %s38
        %v616 = vld [vmem:[%s514] sm:$0xf]
        %v617 = vld [vmem:[%s514 + $0x4] sm:$0xf]
        %v618 = vld [vmem:[%s524] sm:$0xf]
        %v619 = vld [vmem:[%s524 + $0x4] sm:$0xf]
        %v620 = vld [vmem:[%s524 + $0x8] sm:$0xf]
        %v621 = vld [vmem:[%s524 + $0xc] sm:$0xf]
        %v622 = vld [vmem:[%s534] sm:$0xf]
        %v623 = vld [vmem:[%s534 + $0x4] sm:$0xf]
        %v626 = vunpack.c.l.b16 %v616
        %v627 = vunpack.c.l.b16 %v617
        %v628 = vpack.c.b16 %v627, %v626
        %v634 = vunpack.c.l.b16 %v618
        %v635 = vunpack.c.l.b16 %v619
        %v636 = vunpack.c.l.b16 %v620
        %v637 = vunpack.c.l.b16 %v621
        %v638 = vpack.c.b16 %v635, %v634
        %v639 = vpack.c.b16 %v637, %v636
        %v644 = vunpack.c.l.b16 %v622
        %v645 = vunpack.c.l.b16 %v623
        %v646 = vpack.c.b16 %v645, %v644
        %v648 = vld [vmem:[#allocation8] sm:$0xf]
        %v649 = vld [vmem:[#allocation8 + $0x4] sm:$0xf]
        %v650 = vld [vmem:[#allocation8 + $0x8] sm:$0xf]
        %v651 = vld [vmem:[#allocation8 + $0xc] sm:$0xf]
        %v652 = vld [vmem:[#allocation8 + $0x10] sm:$0xf]
        %v653 = vld [vmem:[#allocation8 + $0x14] sm:$0xf]
        %v654 = vld [vmem:[#allocation8 + $0x18] sm:$0xf]
        %v655 = vld [vmem:[#allocation8 + $0x1c] sm:$0xf]
        %v656 = vld [vmem:[#allocation8 + $0x20] sm:$0xf]
        %v657 = vld [vmem:[#allocation8 + $0x24] sm:$0xf]
        %v658 = vld [vmem:[#allocation8 + $0x28] sm:$0xf]
        %v659 = vld [vmem:[#allocation8 + $0x2c] sm:$0xf]
        %v660 = vld [vmem:[#allocation8 + $0x30] sm:$0xf]
        %v661 = vld [vmem:[#allocation8 + $0x34] sm:$0xf]
        %v662 = vld [vmem:[#allocation8 + $0x38] sm:$0xf]
        %v663 = vld [vmem:[#allocation8 + $0x3c] sm:$0xf]
        %v664 = vld [vmem:[%s5] sm:$0x1]
        %v666 = vperm.slane %v664, 0
        %v684 = vunpack.c.l.b16 %v648
        %v685 = vunpack.c.l.b16 %v649
        %v686 = vunpack.c.l.b16 %v650
        %v687 = vunpack.c.l.b16 %v651
        %v688 = vunpack.c.l.b16 %v652
        %v689 = vunpack.c.l.b16 %v653
        %v690 = vunpack.c.l.b16 %v654
        %v691 = vunpack.c.l.b16 %v655
        %v692 = vunpack.c.l.b16 %v656
        %v693 = vunpack.c.l.b16 %v657
        %v694 = vunpack.c.l.b16 %v658
        %v695 = vunpack.c.l.b16 %v659
        %v696 = vunpack.c.l.b16 %v660
        %v697 = vunpack.c.l.b16 %v661
        %v698 = vunpack.c.l.b16 %v662
        %v699 = vunpack.c.l.b16 %v663
        %v700 = vpack.c.b16 %v685, %v684
        %v701 = vpack.c.b16 %v687, %v686
        %v702 = vpack.c.b16 %v689, %v688
        %v703 = vpack.c.b16 %v691, %v690
        %v704 = vpack.c.b16 %v693, %v692
        %v705 = vpack.c.b16 %v695, %v694
        %v706 = vpack.c.b16 %v697, %v696
        %v707 = vpack.c.b16 %v699, %v698
        %716 = vmatpush.bf16.msra.mxu0 %v707
        %717 = vmatpush.bf16.msra.mxu0 %v706
        %718 = vmatpush.bf16.msra.mxu0 %v705
        %719 = vmatpush.bf16.msra.mxu0 %v704
        %720 = vmatpush.bf16.msra.mxu0 %v703
        %721 = vmatpush.bf16.msra.mxu0 %v702
        %722 = vmatpush.bf16.msra.mxu0 %v701
        %723 = vmatpush.bf16.msra.mxu0 %v700
        %724 = vmatmul.bf16.gmra.mxu0 %v628
        %v725 = vpop.f32.mrf.mxu0
        %v726 = vpop.f32.mrf.mxu0
        %v727 = vadd.f32 %v666, %v726
        %728 = vmatmul.bf16.gmra.mxu0 %v638
        %v729 = vpop.f32.mrf.mxu0
        %v730 = vadd.f32 %v666, %v729
        %v731 = vpop.f32.mrf.mxu0
        %v732 = vadd.f32 %v666, %v731
        %733 = vmatmul.bf16.gmra.mxu0 %v639
        %v734 = vpop.f32.mrf.mxu0
        %v735 = vadd.f32 %v666, %v734
        %v736 = vpop.f32.mrf.mxu0
        %v737 = vadd.f32 %v666, %v736
        %738 = vmatmul.bf16.gmra.mxu0 %v646
        %v739 = vpop.f32.mrf.mxu0
        %v740 = vadd.f32 %v666, %v739
        %v741 = vpop.f32.mrf.mxu0
        %742 = vdwg.mxu0
        %v743 = vld [vmem:[#allocation10] sm:$0xf]
        %v744 = vld [vmem:[#allocation10 + $0x4] sm:$0xf]
        %v745 = vld [vmem:[#allocation10 + $0x8] sm:$0xf]
        %v746 = vld [vmem:[#allocation10 + $0xc] sm:$0xf]
        %v747 = vld [vmem:[#allocation10 + $0x10] sm:$0xf]
        %v748 = vld [vmem:[#allocation10 + $0x14] sm:$0xf]
        %v749 = vld [vmem:[#allocation10 + $0x18] sm:$0xf]
        %v750 = vld [vmem:[#allocation10 + $0x1c] sm:$0xf]
        %v751 = vld [vmem:[#allocation10 + $0x20] sm:$0xf]
        %v752 = vld [vmem:[#allocation10 + $0x24] sm:$0xf]
        %v753 = vld [vmem:[#allocation10 + $0x28] sm:$0xf]
        %v754 = vld [vmem:[#allocation10 + $0x2c] sm:$0xf]
        %v755 = vld [vmem:[#allocation10 + $0x30] sm:$0xf]
        %v756 = vld [vmem:[#allocation10 + $0x34] sm:$0xf]
        %v757 = vld [vmem:[#allocation10 + $0x38] sm:$0xf]
        %v758 = vld [vmem:[#allocation10 + $0x3c] sm:$0xf]
        %v759 = vld [vmem:[%s6] sm:$0x1]
        %v761 = vperm.slane %v759, 0
        %v779 = vunpack.c.l.b16 %v743
        %v780 = vunpack.c.l.b16 %v744
        %v781 = vunpack.c.l.b16 %v745
        %v782 = vunpack.c.l.b16 %v746
        %v783 = vunpack.c.l.b16 %v747
        %v784 = vunpack.c.l.b16 %v748
        %v785 = vunpack.c.l.b16 %v749
        %v786 = vunpack.c.l.b16 %v750
        %v787 = vunpack.c.l.b16 %v751
        %v788 = vunpack.c.l.b16 %v752
        %v789 = vunpack.c.l.b16 %v753
        %v790 = vunpack.c.l.b16 %v754
        %v791 = vunpack.c.l.b16 %v755
        %v792 = vunpack.c.l.b16 %v756
        %v793 = vunpack.c.l.b16 %v757
        %v794 = vunpack.c.l.b16 %v758
        %v795 = vpack.c.b16 %v780, %v779
        %v796 = vpack.c.b16 %v782, %v781
        %v797 = vpack.c.b16 %v784, %v783
        %v798 = vpack.c.b16 %v786, %v785
        %v799 = vpack.c.b16 %v788, %v787
        %v800 = vpack.c.b16 %v790, %v789
        %v801 = vpack.c.b16 %v792, %v791
        %v802 = vpack.c.b16 %v794, %v793
        %811 = vmatpush.bf16.msra.mxu0 %v802
        %812 = vmatpush.bf16.msra.mxu0 %v801
        %813 = vmatpush.bf16.msra.mxu0 %v800
        %814 = vmatpush.bf16.msra.mxu0 %v799
        %815 = vmatpush.bf16.msra.mxu0 %v798
        %816 = vmatpush.bf16.msra.mxu0 %v797
        %817 = vmatpush.bf16.msra.mxu0 %v796
        %818 = vmatpush.bf16.msra.mxu0 %v795
        %819 = vmatmul.bf16.gmra.mxu0 %v628
        %v820 = vpop.f32.mrf.mxu0
        %v821 = vpop.f32.mrf.mxu0
        %v822 = vadd.f32 %v761, %v821
        %823 = vmatmul.bf16.gmra.mxu0 %v638
        %v824 = vpop.f32.mrf.mxu0
        %v825 = vadd.f32 %v761, %v824
        %v826 = vpop.f32.mrf.mxu0
        %v827 = vadd.f32 %v761, %v826
        %828 = vmatmul.bf16.gmra.mxu0 %v639
        %v829 = vpop.f32.mrf.mxu0
        %v830 = vadd.f32 %v761, %v829
        %v831 = vpop.f32.mrf.mxu0
        %v832 = vadd.f32 %v761, %v831
        %833 = vmatmul.bf16.gmra.mxu0 %v646
        %v834 = vpop.f32.mrf.mxu0
        %v835 = vadd.f32 %v761, %v834
        %v836 = vpop.f32.mrf.mxu0
        %837 = vdwg.mxu0
        %v838 = vxor.u32 %v822, 2147483648
        %v839 = vxor.u32 %v825, 2147483648
        %v840 = vxor.u32 %v827, 2147483648
        %v841 = vxor.u32 %v830, 2147483648
        %v842 = vxor.u32 %v832, 2147483648
        %v843 = vxor.u32 %v835, 2147483648
        %v844 = vmul.f32 %v838, 1.442695
        %v845 = vpow.pop %v844
        %v846 = vmul.f32 %v839, 1.442695
        %v847 = vpow.pop %v846
        %v848 = vmul.f32 %v840, 1.442695
        %v849 = vpow.pop %v848
        %v850 = vmul.f32 %v841, 1.442695
        %v851 = vpow.pop %v850
        %v852 = vmul.f32 %v842, 1.442695
        %v853 = vpow.pop %v852
        %v854 = vmul.f32 %v843, 1.442695
        %v855 = vpow.pop %v854
        %v856 = vadd.f32 %v845, 1.0
        %v857 = vadd.f32 %v847, 1.0
        %v858 = vadd.f32 %v849, 1.0
        %v859 = vadd.f32 %v851, 1.0
        %v860 = vadd.f32 %v853, 1.0
        %v861 = vadd.f32 %v855, 1.0
        %v862 = vrcp.pop %v856
        %v863 = vmul.f32 %v856, %v862
        %v864 = vsub.f32 1.0, %v863
        %v865 = vmul.f32 %v862, %v864
        %v866 = vadd.f32 %v862, %v865
        %vm867 = vweird.f32 %v856
        %vm868 = vweird.f32 %v862
        %vm869 = vmor %vm867, %vm868
        %v870 = vsel %vm869, %v862, %v866
        %v871 = vand.u32 2147483647, %v856
        %vm872 = vcmp.eq.f32.partialorder %v871, 8.507059e+37
        %v873 = vand.u32 %v856, 2147483648
        %v874 = vor.u32 1.1754944e-38, %v873
        %v875 = vsel %vm872, %v874, %v870
        %v876 = vmul.f32 1.0, %v875
        %v877 = vrcp.pop %v857
        %v878 = vmul.f32 %v857, %v877
        %v879 = vsub.f32 1.0, %v878
        %v880 = vmul.f32 %v877, %v879
        %v881 = vadd.f32 %v877, %v880
        %vm882 = vweird.f32 %v857
        %vm883 = vweird.f32 %v877
        %vm884 = vmor %vm882, %vm883
        %v885 = vsel %vm884, %v877, %v881
        %v886 = vand.u32 2147483647, %v857
        %vm887 = vcmp.eq.f32.partialorder %v886, 8.507059e+37
        %v888 = vand.u32 %v857, 2147483648
        %v889 = vor.u32 1.1754944e-38, %v888
        %v890 = vsel %vm887, %v889, %v885
        %v891 = vmul.f32 1.0, %v890
        %v892 = vrcp.pop %v858
        %v893 = vmul.f32 %v858, %v892
        %v894 = vsub.f32 1.0, %v893
        %v895 = vmul.f32 %v892, %v894
        %v896 = vadd.f32 %v892, %v895
        %vm897 = vweird.f32 %v858
        %vm898 = vweird.f32 %v892
        %vm899 = vmor %vm897, %vm898
        %v900 = vsel %vm899, %v892, %v896
        %v901 = vand.u32 2147483647, %v858
        %vm902 = vcmp.eq.f32.partialorder %v901, 8.507059e+37
        %v903 = vand.u32 %v858, 2147483648
        %v904 = vor.u32 1.1754944e-38, %v903
        %v905 = vsel %vm902, %v904, %v900
        %v906 = vmul.f32 1.0, %v905
        %v907 = vrcp.pop %v859
        %v908 = vmul.f32 %v859, %v907
        %v909 = vsub.f32 1.0, %v908
        %v910 = vmul.f32 %v907, %v909
        %v911 = vadd.f32 %v907, %v910
        %vm912 = vweird.f32 %v859
        %vm913 = vweird.f32 %v907
        %vm914 = vmor %vm912, %vm913
        %v915 = vsel %vm914, %v907, %v911
        %v916 = vand.u32 2147483647, %v859
        %vm917 = vcmp.eq.f32.partialorder %v916, 8.507059e+37
        %v918 = vand.u32 %v859, 2147483648
        %v919 = vor.u32 1.1754944e-38, %v918
        %v920 = vsel %vm917, %v919, %v915
        %v921 = vmul.f32 1.0, %v920
        %v922 = vrcp.pop %v860
        %v923 = vmul.f32 %v860, %v922
        %v924 = vsub.f32 1.0, %v923
        %v925 = vmul.f32 %v922, %v924
        %v926 = vadd.f32 %v922, %v925
        %vm927 = vweird.f32 %v860
        %vm928 = vweird.f32 %v922
        %vm929 = vmor %vm927, %vm928
        %v930 = vsel %vm929, %v922, %v926
        %v931 = vand.u32 2147483647, %v860
        %vm932 = vcmp.eq.f32.partialorder %v931, 8.507059e+37
        %v933 = vand.u32 %v860, 2147483648
        %v934 = vor.u32 1.1754944e-38, %v933
        %v935 = vsel %vm932, %v934, %v930
        %v936 = vmul.f32 1.0, %v935
        %v937 = vrcp.pop %v861
        %v938 = vmul.f32 %v861, %v937
        %v939 = vsub.f32 1.0, %v938
        %v940 = vmul.f32 %v937, %v939
        %v941 = vadd.f32 %v937, %v940
        %vm942 = vweird.f32 %v861
        %vm943 = vweird.f32 %v937
        %vm944 = vmor %vm942, %vm943
        %v945 = vsel %vm944, %v937, %v941
        %v946 = vand.u32 2147483647, %v861
        %vm947 = vcmp.eq.f32.partialorder %v946, 8.507059e+37
        %v948 = vand.u32 %v861, 2147483648
        %v949 = vor.u32 1.1754944e-38, %v948
        %v950 = vsel %vm947, %v949, %v945
        %v951 = vmul.f32 1.0, %v950
        %v952 = vmul.f32 %v727, %v876
        %v953 = vmul.f32 %v730, %v891
        %v954 = vmul.f32 %v732, %v906
        %v955 = vmul.f32 %v735, %v921
        %v956 = vmul.f32 %v737, %v936
        %v957 = vmul.f32 %v740, %v951
        %v958 = vlaneseq
        %v959 = vshrl.u32 %v958, 7
        %v960 = vadd.s32 %v959, 8
        %v961 = vadd.s32 %v959, 16
        %v962 = vadd.s32 %v959, 24
        %v963 = vadd.s32 %v959, 32
        %v964 = vadd.s32 %v959, 40
        %v965 = vadd.s32 %v959, 48
        %s966 = smul.u32 %s38, 32
        %s967 = ssub.s32 %s966, 16
        %v968 = vstv %s967
        %v969 = vadd.s32 %v960, %v968
        %v970 = vadd.s32 %v961, %v968
        %v971 = vadd.s32 %v962, %v968
        %v972 = vadd.s32 %v963, %v968
        %v973 = vadd.s32 %v964, %v968
        %v974 = vadd.s32 %v965, %v968
        %vm975 = vcmp.ge.s32.totalorder %v969, 0
        %vm976 = vcmp.ge.s32.totalorder %v970, 0
        %vm977 = vcmp.ge.s32.totalorder %v971, 0
        %vm978 = vcmp.ge.s32.totalorder %v972, 0
        %vm979 = vcmp.ge.s32.totalorder %v973, 0
        %vm980 = vcmp.ge.s32.totalorder %v974, 0
        %vm981 = vcmp.lt.s32.totalorder %v969, 80
        %vm982 = vcmp.lt.s32.totalorder %v970, 80
        %vm983 = vcmp.lt.s32.totalorder %v971, 80
        %vm984 = vcmp.lt.s32.totalorder %v972, 80
        %vm985 = vcmp.lt.s32.totalorder %v973, 80
        %vm986 = vcmp.lt.s32.totalorder %v974, 80
        %vm987 = vmand %vm975, %vm981
        %vm988 = vmand %vm976, %vm982
        %vm989 = vmand %vm977, %vm983
        %vm990 = vmand %vm978, %vm984
        %vm991 = vmand %vm979, %vm985
        %vm992 = vmand %vm980, %vm986
        %v993 = vsel %vm987, 1, 0
        %v994 = vsel %vm988, 1, 0
        %v995 = vsel %vm989, 1, 0
        %v996 = vsel %vm990, 1, 0
        %v997 = vsel %vm991, 1, 0
        %v998 = vsel %vm992, 1, 0
        %vm999 = vcmp.eq.s32.totalorder %v993, 1
        %vm1000 = vcmp.eq.s32.totalorder %v994, 1
        %vm1001 = vcmp.eq.s32.totalorder %v995, 1
        %vm1002 = vcmp.eq.s32.totalorder %v996, 1
        %vm1003 = vcmp.eq.s32.totalorder %v997, 1
        %vm1004 = vcmp.eq.s32.totalorder %v998, 1
        %v1005 = vsel %vm999, %v952, 0.0
        %v1006 = vsel %vm1000, %v953, 0.0
        %v1007 = vsel %vm1001, %v954, 0.0
        %v1008 = vsel %vm1002, %v955, 0.0
        %v1009 = vsel %vm1003, %v956, 0.0
        %v1010 = vsel %vm1004, %v957, 0.0
        %v1011 = vld [vmem:[#allocation11] sm:$0x1]
        %v1012 = vperm.slane %v1011, 0
        %v1013 = vmul.f32 %v1005, %v1012
        %v1014 = vmul.f32 %v1006, %v1012
        %v1015 = vmul.f32 %v1007, %v1012
        %v1016 = vmul.f32 %v1008, %v1012
        %v1017 = vmul.f32 %v1009, %v1012
        %v1018 = vadd.f32 %v1013, 0.0
        %v1019 = vadd.f32 %v1014, 0.0
        %v1020 = vadd.f32 %v1015, 0.0
        %v1021 = vadd.f32 %v1016, 0.0
        %v1022 = vadd.f32 %v1017, 0.0
        %v1023 = vld [vmem:[#allocation11 + $0x1] sm:$0x1]
        %v1024 = vperm.slane %v1023, 0
        %v1025 = vmul.f32 %v1005, %v1024
        %v1026 = vmul.f32 %v1006, %v1024
        %v1027 = vmul.f32 %v1007, %v1024
        %v1028 = vmul.f32 %v1008, %v1024
        %v1029 = vmul.f32 %v1009, %v1024
        %vm1035 = vcmask 1046528
        %v1036 = vrot.slane %v1025, 1
        %v1037 = vrot.slane %v1026, 1
        %v1038 = vsel %vm1035, %v1036, %v1037
        %v1039 = vrot.slane %v1027, 1
        %v1040 = vsel %vm1035, %v1037, %v1039
        %v1041 = vrot.slane %v1028, 1
        %v1042 = vsel %vm1035, %v1039, %v1041
        %v1043 = vrot.slane %v1029, 1
        %v1044 = vsel %vm1035, %v1041, %v1043
        %v1050 = vadd.f32 %v1018, %v1038
        %v1051 = vadd.f32 %v1019, %v1040
        %v1052 = vadd.f32 %v1020, %v1042
        %v1053 = vadd.f32 %v1021, %v1044
        %v1054 = vadd.f32 %v1022, %v1043
        %v1055 = vld [vmem:[#allocation11 + $0x2] sm:$0x1]
        %v1056 = vperm.slane %v1055, 0
        %v1057 = vmul.f32 %v1005, %v1056
        %v1058 = vmul.f32 %v1006, %v1056
        %v1059 = vmul.f32 %v1007, %v1056
        %v1060 = vmul.f32 %v1008, %v1056
        %v1061 = vmul.f32 %v1009, %v1056
        %vm1067 = vcmask 1045504
        %v1068 = vrot.slane %v1057, 2
        %v1069 = vrot.slane %v1058, 2
        %v1070 = vsel %vm1067, %v1068, %v1069
        %v1071 = vrot.slane %v1059, 2
        %v1072 = vsel %vm1067, %v1069, %v1071
        %v1073 = vrot.slane %v1060, 2
        %v1074 = vsel %vm1067, %v1071, %v1073
        %v1075 = vrot.slane %v1061, 2
        %v1076 = vsel %vm1067, %v1073, %v1075
        %v1082 = vadd.f32 %v1050, %v1070
        %v1083 = vadd.f32 %v1051, %v1072
        %v1084 = vadd.f32 %v1052, %v1074
        %v1085 = vadd.f32 %v1053, %v1076
        %v1086 = vadd.f32 %v1054, %v1075
        %v1087 = vld [vmem:[#allocation11 + $0x3] sm:$0x1]
        %v1088 = vperm.slane %v1087, 0
        %v1089 = vmul.f32 %v1005, %v1088
        %v1090 = vmul.f32 %v1006, %v1088
        %v1091 = vmul.f32 %v1007, %v1088
        %v1092 = vmul.f32 %v1008, %v1088
        %v1093 = vmul.f32 %v1009, %v1088
        %vm1099 = vcmask 1044480
        %v1100 = vrot.slane %v1089, 3
        %v1101 = vrot.slane %v1090, 3
        %v1102 = vsel %vm1099, %v1100, %v1101
        %v1103 = vrot.slane %v1091, 3
        %v1104 = vsel %vm1099, %v1101, %v1103
        %v1105 = vrot.slane %v1092, 3
        %v1106 = vsel %vm1099, %v1103, %v1105
        %v1107 = vrot.slane %v1093, 3
        %v1108 = vsel %vm1099, %v1105, %v1107
        %v1114 = vadd.f32 %v1082, %v1102
        %v1115 = vadd.f32 %v1083, %v1104
        %v1116 = vadd.f32 %v1084, %v1106
        %v1117 = vadd.f32 %v1085, %v1108
        %v1118 = vadd.f32 %v1086, %v1107
        %v1119 = vld [vmem:[#allocation11 + $0x4] sm:$0x1]
        %v1120 = vperm.slane %v1119, 0
        %v1121 = vmul.f32 %v1005, %v1120
        %v1122 = vmul.f32 %v1006, %v1120
        %v1123 = vmul.f32 %v1007, %v1120
        %v1124 = vmul.f32 %v1008, %v1120
        %v1125 = vmul.f32 %v1009, %v1120
        %vm1131 = vcmask 1043456
        %v1132 = vrot.slane %v1121, 4
        %v1133 = vrot.slane %v1122, 4
        %v1134 = vsel %vm1131, %v1132, %v1133
        %v1135 = vrot.slane %v1123, 4
        %v1136 = vsel %vm1131, %v1133, %v1135
        %v1137 = vrot.slane %v1124, 4
        %v1138 = vsel %vm1131, %v1135, %v1137
        %v1139 = vrot.slane %v1125, 4
        %v1140 = vsel %vm1131, %v1137, %v1139
        %v1146 = vadd.f32 %v1114, %v1134
        %v1147 = vadd.f32 %v1115, %v1136
        %v1148 = vadd.f32 %v1116, %v1138
        %v1149 = vadd.f32 %v1117, %v1140
        %v1150 = vadd.f32 %v1118, %v1139
        %v1151 = vld [vmem:[#allocation11 + $0x5] sm:$0x1]
        %v1152 = vperm.slane %v1151, 0
        %v1153 = vmul.f32 %v1005, %v1152
        %v1154 = vmul.f32 %v1006, %v1152
        %v1155 = vmul.f32 %v1007, %v1152
        %v1156 = vmul.f32 %v1008, %v1152
        %v1157 = vmul.f32 %v1009, %v1152
        %vm1163 = vcmask 1042432
        %v1164 = vrot.slane %v1153, 5
        %v1165 = vrot.slane %v1154, 5
        %v1166 = vsel %vm1163, %v1164, %v1165
        %v1167 = vrot.slane %v1155, 5
        %v1168 = vsel %vm1163, %v1165, %v1167
        %v1169 = vrot.slane %v1156, 5
        %v1170 = vsel %vm1163, %v1167, %v1169
        %v1171 = vrot.slane %v1157, 5
        %v1172 = vsel %vm1163, %v1169, %v1171
        %v1178 = vadd.f32 %v1146, %v1166
        %v1179 = vadd.f32 %v1147, %v1168
        %v1180 = vadd.f32 %v1148, %v1170
        %v1181 = vadd.f32 %v1149, %v1172
        %v1182 = vadd.f32 %v1150, %v1171
        %v1183 = vld [vmem:[#allocation11 + $0x6] sm:$0x1]
        %v1184 = vperm.slane %v1183, 0
        %v1185 = vmul.f32 %v1005, %v1184
        %v1186 = vmul.f32 %v1006, %v1184
        %v1187 = vmul.f32 %v1007, %v1184
        %v1188 = vmul.f32 %v1008, %v1184
        %v1189 = vmul.f32 %v1009, %v1184
        %vm1195 = vcmask 1041408
        %v1196 = vrot.slane %v1185, 6
        %v1197 = vrot.slane %v1186, 6
        %v1198 = vsel %vm1195, %v1196, %v1197
        %v1199 = vrot.slane %v1187, 6
        %v1200 = vsel %vm1195, %v1197, %v1199
        %v1201 = vrot.slane %v1188, 6
        %v1202 = vsel %vm1195, %v1199, %v1201
        %v1203 = vrot.slane %v1189, 6
        %v1204 = vsel %vm1195, %v1201, %v1203
        %v1210 = vadd.f32 %v1178, %v1198
        %v1211 = vadd.f32 %v1179, %v1200
        %v1212 = vadd.f32 %v1180, %v1202
        %v1213 = vadd.f32 %v1181, %v1204
        %v1214 = vadd.f32 %v1182, %v1203
        %v1215 = vld [vmem:[#allocation11 + $0x7] sm:$0x1]
        %v1216 = vperm.slane %v1215, 0
        %v1217 = vmul.f32 %v1006, %v1216
        %v1218 = vmul.f32 %v1007, %v1216
        %v1219 = vmul.f32 %v1008, %v1216
        %v1220 = vmul.f32 %v1009, %v1216
        %vm1225 = vcmask 1040384
        %v1226 = vrot.slane %v1217, 7
        %v1227 = vrot.slane %v1218, 7
        %v1228 = vsel %vm1225, %v1226, %v1227
        %v1229 = vrot.slane %v1219, 7
        %v1230 = vsel %vm1225, %v1227, %v1229
        %v1231 = vrot.slane %v1220, 7
        %v1232 = vsel %vm1225, %v1229, %v1231
        %v1238 = vadd.f32 %v1210, %v1226
        %v1239 = vadd.f32 %v1211, %v1228
        %v1240 = vadd.f32 %v1212, %v1230
        %v1241 = vadd.f32 %v1213, %v1232
        %v1242 = vadd.f32 %v1214, %v1231
        %v1243 = vld [vmem:[#allocation11 + $0x8] sm:$0x1]
        %v1244 = vperm.slane %v1243, 0
        %v1245 = vmul.f32 %v1006, %v1244
        %v1246 = vmul.f32 %v1007, %v1244
        %v1247 = vmul.f32 %v1008, %v1244
        %v1248 = vmul.f32 %v1009, %v1244
        %v1249 = vmul.f32 %v1010, %v1244
        %v1250 = vadd.f32 %v1238, %v1245
        %v1251 = vadd.f32 %v1239, %v1246
        %v1252 = vadd.f32 %v1240, %v1247
        %v1253 = vadd.f32 %v1241, %v1248
        %v1254 = vadd.f32 %v1242, %v1249
        %v1255 = vld [vmem:[#allocation11 + $0x9] sm:$0x1]
        %v1256 = vperm.slane %v1255, 0
        %v1257 = vmul.f32 %v1006, %v1256
        %v1258 = vmul.f32 %v1007, %v1256
        %v1259 = vmul.f32 %v1008, %v1256
        %v1260 = vmul.f32 %v1009, %v1256
        %v1261 = vmul.f32 %v1010, %v1256
        %v1267 = vrot.slane %v1257, 1
        %v1268 = vrot.slane %v1258, 1
        %v1269 = vsel %vm1035, %v1267, %v1268
        %v1270 = vrot.slane %v1259, 1
        %v1271 = vsel %vm1035, %v1268, %v1270
        %v1272 = vrot.slane %v1260, 1
        %v1273 = vsel %vm1035, %v1270, %v1272
        %v1274 = vrot.slane %v1261, 1
        %v1275 = vsel %vm1035, %v1272, %v1274
        %v1281 = vadd.f32 %v1250, %v1269
        %v1282 = vadd.f32 %v1251, %v1271
        %v1283 = vadd.f32 %v1252, %v1273
        %v1284 = vadd.f32 %v1253, %v1275
        %v1285 = vadd.f32 %v1254, %v1274
        %v1286 = vld [vmem:[#allocation11 + $0xa] sm:$0x1]
        %v1287 = vperm.slane %v1286, 0
        %v1288 = vmul.f32 %v1006, %v1287
        %v1289 = vmul.f32 %v1007, %v1287
        %v1290 = vmul.f32 %v1008, %v1287
        %v1291 = vmul.f32 %v1009, %v1287
        %v1292 = vmul.f32 %v1010, %v1287
        %v1298 = vrot.slane %v1288, 2
        %v1299 = vrot.slane %v1289, 2
        %v1300 = vsel %vm1067, %v1298, %v1299
        %v1301 = vrot.slane %v1290, 2
        %v1302 = vsel %vm1067, %v1299, %v1301
        %v1303 = vrot.slane %v1291, 2
        %v1304 = vsel %vm1067, %v1301, %v1303
        %v1305 = vrot.slane %v1292, 2
        %v1306 = vsel %vm1067, %v1303, %v1305
        %v1312 = vadd.f32 %v1281, %v1300
        %v1313 = vadd.f32 %v1282, %v1302
        %v1314 = vadd.f32 %v1283, %v1304
        %v1315 = vadd.f32 %v1284, %v1306
        %v1316 = vadd.f32 %v1285, %v1305
        %v1317 = vld [vmem:[#allocation11 + $0xb] sm:$0x1]
        %v1318 = vperm.slane %v1317, 0
        %v1319 = vmul.f32 %v1006, %v1318
        %v1320 = vmul.f32 %v1007, %v1318
        %v1321 = vmul.f32 %v1008, %v1318
        %v1322 = vmul.f32 %v1009, %v1318
        %v1323 = vmul.f32 %v1010, %v1318
        %v1329 = vrot.slane %v1319, 3
        %v1330 = vrot.slane %v1320, 3
        %v1331 = vsel %vm1099, %v1329, %v1330
        %v1332 = vrot.slane %v1321, 3
        %v1333 = vsel %vm1099, %v1330, %v1332
        %v1334 = vrot.slane %v1322, 3
        %v1335 = vsel %vm1099, %v1332, %v1334
        %v1336 = vrot.slane %v1323, 3
        %v1337 = vsel %vm1099, %v1334, %v1336
        %v1343 = vadd.f32 %v1312, %v1331
        %v1344 = vadd.f32 %v1313, %v1333
        %v1345 = vadd.f32 %v1314, %v1335
        %v1346 = vadd.f32 %v1315, %v1337
        %v1347 = vadd.f32 %v1316, %v1336
        %v1348 = vld [vmem:[#allocation11 + $0xc] sm:$0x1]
        %v1349 = vperm.slane %v1348, 0
        %v1350 = vmul.f32 %v1006, %v1349
        %v1351 = vmul.f32 %v1007, %v1349
        %v1352 = vmul.f32 %v1008, %v1349
        %v1353 = vmul.f32 %v1009, %v1349
        %v1354 = vmul.f32 %v1010, %v1349
        %v1360 = vrot.slane %v1350, 4
        %v1361 = vrot.slane %v1351, 4
        %v1362 = vsel %vm1131, %v1360, %v1361
        %v1363 = vrot.slane %v1352, 4
        %v1364 = vsel %vm1131, %v1361, %v1363
        %v1365 = vrot.slane %v1353, 4
        %v1366 = vsel %vm1131, %v1363, %v1365
        %v1367 = vrot.slane %v1354, 4
        %v1368 = vsel %vm1131, %v1365, %v1367
        %v1374 = vadd.f32 %v1343, %v1362
        %v1375 = vadd.f32 %v1344, %v1364
        %v1376 = vadd.f32 %v1345, %v1366
        %v1377 = vadd.f32 %v1346, %v1368
        %v1378 = vadd.f32 %v1347, %v1367
        %v1379 = vld [vmem:[#allocation11 + $0xd] sm:$0x1]
        %v1380 = vperm.slane %v1379, 0
        %v1381 = vmul.f32 %v1006, %v1380
        %v1382 = vmul.f32 %v1007, %v1380
        %v1383 = vmul.f32 %v1008, %v1380
        %v1384 = vmul.f32 %v1009, %v1380
        %v1385 = vmul.f32 %v1010, %v1380
        %v1391 = vrot.slane %v1381, 5
        %v1392 = vrot.slane %v1382, 5
        %v1393 = vsel %vm1163, %v1391, %v1392
        %v1394 = vrot.slane %v1383, 5
        %v1395 = vsel %vm1163, %v1392, %v1394
        %v1396 = vrot.slane %v1384, 5
        %v1397 = vsel %vm1163, %v1394, %v1396
        %v1398 = vrot.slane %v1385, 5
        %v1399 = vsel %vm1163, %v1396, %v1398
        %v1405 = vadd.f32 %v1374, %v1393
        %v1406 = vadd.f32 %v1375, %v1395
        %v1407 = vadd.f32 %v1376, %v1397
        %v1408 = vadd.f32 %v1377, %v1399
        %v1409 = vadd.f32 %v1378, %v1398
        %v1410 = vld [vmem:[#allocation11 + $0xe] sm:$0x1]
        %v1411 = vperm.slane %v1410, 0
        %v1412 = vmul.f32 %v1006, %v1411
        %v1413 = vmul.f32 %v1007, %v1411
        %v1414 = vmul.f32 %v1008, %v1411
        %v1415 = vmul.f32 %v1009, %v1411
        %v1416 = vmul.f32 %v1010, %v1411
        %v1422 = vrot.slane %v1412, 6
        %v1423 = vrot.slane %v1413, 6
        %v1424 = vsel %vm1195, %v1422, %v1423
        %v1425 = vrot.slane %v1414, 6
        %v1426 = vsel %vm1195, %v1423, %v1425
        %v1427 = vrot.slane %v1415, 6
        %v1428 = vsel %vm1195, %v1425, %v1427
        %v1429 = vrot.slane %v1416, 6
        %v1430 = vsel %vm1195, %v1427, %v1429
        %v1436 = vadd.f32 %v1405, %v1424
        %v1437 = vadd.f32 %v1406, %v1426
        %v1438 = vadd.f32 %v1407, %v1428
        %v1439 = vadd.f32 %v1408, %v1430
        %v1440 = vadd.f32 %v1409, %v1429
        %v1441 = vld [vmem:[%s8] sm:$0x1]
        %v1443 = vperm.slane %v1441, 0
        %v1445 = vadd.f32 %v1436, %v1443
        %v1446 = vadd.f32 %v1437, %v1443
        %v1447 = vadd.f32 %v1438, %v1443
        %v1448 = vadd.f32 %v1439, %v1443
        %v1449 = vadd.f32 %v1440, %v1443
        %v1450 = vxor.u32 %v1445, 2147483648
        %v1451 = vxor.u32 %v1446, 2147483648
        %v1452 = vxor.u32 %v1447, 2147483648
        %v1453 = vxor.u32 %v1448, 2147483648
        %v1454 = vxor.u32 %v1449, 2147483648
        %v1455 = vmul.f32 %v1450, 1.442695
        %v1456 = vpow.pop %v1455
        %v1457 = vmul.f32 %v1451, 1.442695
        %v1458 = vpow.pop %v1457
        %v1459 = vmul.f32 %v1452, 1.442695
        %v1460 = vpow.pop %v1459
        %v1461 = vmul.f32 %v1453, 1.442695
        %v1462 = vpow.pop %v1461
        %v1463 = vmul.f32 %v1454, 1.442695
        %v1464 = vpow.pop %v1463
        %v1465 = vadd.f32 %v1456, 1.0
        %v1466 = vadd.f32 %v1458, 1.0
        %v1467 = vadd.f32 %v1460, 1.0
        %v1468 = vadd.f32 %v1462, 1.0
        %v1469 = vadd.f32 %v1464, 1.0
        %v1470 = vrcp.pop %v1465
        %v1471 = vmul.f32 %v1465, %v1470
        %v1472 = vsub.f32 1.0, %v1471
        %v1473 = vmul.f32 %v1470, %v1472
        %v1474 = vadd.f32 %v1470, %v1473
        %vm1475 = vweird.f32 %v1465
        %vm1476 = vweird.f32 %v1470
        %vm1477 = vmor %vm1475, %vm1476
        %v1478 = vsel %vm1477, %v1470, %v1474
        %v1479 = vand.u32 2147483647, %v1465
        %vm1480 = vcmp.eq.f32.partialorder %v1479, 8.507059e+37
        %v1481 = vand.u32 %v1465, 2147483648
        %v1482 = vor.u32 1.1754944e-38, %v1481
        %v1483 = vsel %vm1480, %v1482, %v1478
        %v1484 = vmul.f32 1.0, %v1483
        %v1485 = vrcp.pop %v1466
        %v1486 = vmul.f32 %v1466, %v1485
        %v1487 = vsub.f32 1.0, %v1486
        %v1488 = vmul.f32 %v1485, %v1487
        %v1489 = vadd.f32 %v1485, %v1488
        %vm1490 = vweird.f32 %v1466
        %vm1491 = vweird.f32 %v1485
        %vm1492 = vmor %vm1490, %vm1491
        %v1493 = vsel %vm1492, %v1485, %v1489
        %v1494 = vand.u32 2147483647, %v1466
        %vm1495 = vcmp.eq.f32.partialorder %v1494, 8.507059e+37
        %v1496 = vand.u32 %v1466, 2147483648
        %v1497 = vor.u32 1.1754944e-38, %v1496
        %v1498 = vsel %vm1495, %v1497, %v1493
        %v1499 = vmul.f32 1.0, %v1498
        %v1500 = vrcp.pop %v1467
        %v1501 = vmul.f32 %v1467, %v1500
        %v1502 = vsub.f32 1.0, %v1501
        %v1503 = vmul.f32 %v1500, %v1502
        %v1504 = vadd.f32 %v1500, %v1503
        %vm1505 = vweird.f32 %v1467
        %vm1506 = vweird.f32 %v1500
        %vm1507 = vmor %vm1505, %vm1506
        %v1508 = vsel %vm1507, %v1500, %v1504
        %v1509 = vand.u32 2147483647, %v1467
        %vm1510 = vcmp.eq.f32.partialorder %v1509, 8.507059e+37
        %v1511 = vand.u32 %v1467, 2147483648
        %v1512 = vor.u32 1.1754944e-38, %v1511
        %v1513 = vsel %vm1510, %v1512, %v1508
        %v1514 = vmul.f32 1.0, %v1513
        %v1515 = vrcp.pop %v1468
        %v1516 = vmul.f32 %v1468, %v1515
        %v1517 = vsub.f32 1.0, %v1516
        %v1518 = vmul.f32 %v1515, %v1517
        %v1519 = vadd.f32 %v1515, %v1518
        %vm1520 = vweird.f32 %v1468
        %vm1521 = vweird.f32 %v1515
        %vm1522 = vmor %vm1520, %vm1521
        %v1523 = vsel %vm1522, %v1515, %v1519
        %v1524 = vand.u32 2147483647, %v1468
        %vm1525 = vcmp.eq.f32.partialorder %v1524, 8.507059e+37
        %v1526 = vand.u32 %v1468, 2147483648
        %v1527 = vor.u32 1.1754944e-38, %v1526
        %v1528 = vsel %vm1525, %v1527, %v1523
        %v1529 = vmul.f32 1.0, %v1528
        %v1530 = vrcp.pop %v1469
        %v1531 = vmul.f32 %v1469, %v1530
        %v1532 = vsub.f32 1.0, %v1531
        %v1533 = vmul.f32 %v1530, %v1532
        %v1534 = vadd.f32 %v1530, %v1533
        %vm1535 = vweird.f32 %v1469
        %vm1536 = vweird.f32 %v1530
        %vm1537 = vmor %vm1535, %vm1536
        %v1538 = vsel %vm1537, %v1530, %v1534
        %v1539 = vand.u32 2147483647, %v1469
        %vm1540 = vcmp.eq.f32.partialorder %v1539, 8.507059e+37
        %v1541 = vand.u32 %v1469, 2147483648
        %v1542 = vor.u32 1.1754944e-38, %v1541
        %v1543 = vsel %vm1540, %v1542, %v1538
        %v1544 = vmul.f32 1.0, %v1543
        %v1545 = vmul.f32 %v1445, %v1484
        %v1546 = vmul.f32 %v1446, %v1499
        %v1547 = vmul.f32 %v1447, %v1514
        %v1548 = vmul.f32 %v1448, %v1529
        %v1549 = vmul.f32 %v1449, %v1544
        %v1550 = vpack.c.bf16 %v1546, %v1545
        %v1551 = vpack.c.bf16 %v1548, %v1547
        %v1552 = vpack.c.bf16 %v1549, %v1549
        %v1553 = vld [vmem:[#allocation13] sm:$0xf]
        %v1554 = vld [vmem:[#allocation13 + $0x4] sm:$0xf]
        %v1555 = vld [vmem:[#allocation13 + $0x8] sm:$0xf]
        %v1556 = vld [vmem:[#allocation13 + $0xc] sm:$0xf]
        %v1557 = vld [vmem:[#allocation13 + $0x10] sm:$0xf]
        %v1558 = vld [vmem:[#allocation13 + $0x14] sm:$0xf]
        %v1559 = vld [vmem:[#allocation13 + $0x18] sm:$0xf]
        %v1560 = vld [vmem:[#allocation13 + $0x1c] sm:$0xf]
        %v1561 = vld [vmem:[#allocation13 + $0x20] sm:$0xf]
        %v1562 = vld [vmem:[#allocation13 + $0x24] sm:$0xf]
        %v1563 = vld [vmem:[#allocation13 + $0x28] sm:$0xf]
        %v1564 = vld [vmem:[#allocation13 + $0x2c] sm:$0xf]
        %v1565 = vld [vmem:[#allocation13 + $0x30] sm:$0xf]
        %v1566 = vld [vmem:[#allocation13 + $0x34] sm:$0xf]
        %v1567 = vld [vmem:[#allocation13 + $0x38] sm:$0xf]
        %v1568 = vld [vmem:[#allocation13 + $0x3c] sm:$0xf]
        %v1569 = vld [vmem:[%s10] sm:$0x1]
        %v1571 = vperm.slane %v1569, 0
        %vm1573 = vsmask.f32 7424
        %v1575 = vshrl.u32 %v1550, 16
        %v1577 = vshll.u32 %v1550, 16
        %v1579 = vrot.slane %v1577, 1
        %v1580 = vor.u32 %v1575, %v1579
        %v1582 = vshll.u32 %v1551, 16
        %v1584 = vrot.slane %v1582, 1
        %v1585 = vsel %vm1573, %v1580, %v1584
        %v1586 = vshrl.u32 %v1551, 16
        %v1588 = vor.u32 %v1586, %v1584
        %v1590 = vshll.u32 %v1552, 16
        %v1592 = vrot.slane %v1590, 1
        %v1593 = vsel %vm1573, %v1588, %v1592
        %v1612 = vunpack.c.l.b16 %v1553
        %v1613 = vunpack.c.l.b16 %v1554
        %v1614 = vunpack.c.l.b16 %v1555
        %v1615 = vunpack.c.l.b16 %v1556
        %v1616 = vunpack.c.l.b16 %v1557
        %v1617 = vunpack.c.l.b16 %v1558
        %v1618 = vunpack.c.l.b16 %v1559
        %v1619 = vunpack.c.l.b16 %v1560
        %v1620 = vunpack.c.l.b16 %v1561
        %v1621 = vunpack.c.l.b16 %v1562
        %v1622 = vunpack.c.l.b16 %v1563
        %v1623 = vunpack.c.l.b16 %v1564
        %v1624 = vunpack.c.l.b16 %v1565
        %v1625 = vunpack.c.l.b16 %v1566
        %v1626 = vunpack.c.l.b16 %v1567
        %v1627 = vunpack.c.l.b16 %v1568
        %v1628 = vpack.c.b16 %v1613, %v1612
        %v1629 = vpack.c.b16 %v1615, %v1614
        %v1630 = vpack.c.b16 %v1617, %v1616
        %v1631 = vpack.c.b16 %v1619, %v1618
        %v1632 = vpack.c.b16 %v1621, %v1620
        %v1633 = vpack.c.b16 %v1623, %v1622
        %v1634 = vpack.c.b16 %v1625, %v1624
        %v1635 = vpack.c.b16 %v1627, %v1626
        %1644 = vmatpush.bf16.msra.mxu0 %v1635
        %1645 = vmatpush.bf16.msra.mxu0 %v1634
        %1646 = vmatpush.bf16.msra.mxu0 %v1633
        %1647 = vmatpush.bf16.msra.mxu0 %v1632
        %1648 = vmatpush.bf16.msra.mxu0 %v1631
        %1649 = vmatpush.bf16.msra.mxu0 %v1630
        %1650 = vmatpush.bf16.msra.mxu0 %v1629
        %1651 = vmatpush.bf16.msra.mxu0 %v1628
        %1652 = vmatmul.bf16.gmra.mxu0 %v1585
        %v1653 = vpop.f32.mrf.mxu0
        %v1654 = vadd.f32 %v1571, %v1653
        %v1655 = vpop.f32.mrf.mxu0
        %v1656 = vadd.f32 %v1571, %v1655
        %1657 = vmatmul.bf16.gmra.mxu0 %v1593
        %v1658 = vpop.f32.mrf.mxu0
        %v1659 = vadd.f32 %v1571, %v1658
        %v1660 = vpop.f32.mrf.mxu0
        %v1661 = vadd.f32 %v1571, %v1660
        %1662 = vdwg.mxu0
        %1663 = vst [vmem:[%s603] sm:$0xff] %v1654
        %1664 = vst [vmem:[%s603 + $0x8] sm:$0xff] %v1656
        %1665 = vst [vmem:[%s603 + $0x10] sm:$0xff] %v1659
        %1666 = vst [vmem:[%s603 + $0x18] sm:$0xff] %v1661
        %s1667 = sand.u32 %s323, 1
        %s1668 = scalar_lea.sflag [#allocation4], %s1667
        %s1669 = sand.u32 %s323, 1
        %s1670 = smul.addr %s1669, 32
        %s1671 = scalar_lea.vmem [#allocation14], %s1670
        // Predicated region
        $region93: #{tpu_custom_call.1} parent=63 // pred_check
          %p1672 = pneg %p333
        $region94: #{tpu_custom_call.1} parent=63 // pred_check_branch
          %1674 = sbr.rel (%p1672) target = $region96
        $region95: #{tpu_custom_call.1} parent=63 // pred_region
          %s1675 = smul.u32 4, %s38
          %1677 = vsyncadd %s1668, 0
          %s1678 = smul.addr %s37, 12
          %s1679 = sadd.s32 %s1675, %s1678
          %s1680 = smul.addr %s1679, 8
          %s1681 = scalar_lea.hbm %s11, %s1680
          %s1682 = sshll.u32 %s1671, 4
          %s1683 = int_to_ptr.vmem [resolvable:$true] %s1682
          %s1684 = sshll.u32 %s1681, 4
          %s1685 = int_to_ptr.hbm [resolvable:$true] %s1684
          %1690 = dma.vmem_to_hbm [thread:$0]  %s1683, 512, %s1685, %s1668, 128, 128, 8
        $region96: #{tpu_custom_call.1} parent=63 // pred_fallthru
          _
      $region64: #{tpu_custom_call.1} parent=5 // pred_fallthru
        _
      %p1691 = scmp.le.s32.totalorder 2, %s28
      // Predicated region
      $region97: #{tpu_custom_call.1} parent=5 // pred_check
        %p1692 = pneg %p1691
      $region98: #{tpu_custom_call.1} parent=5 // pred_check_branch
        %1694 = sbr.rel (%p1692) target = $region100
      $region99: #{tpu_custom_call.1} parent=5 // pred_region
        %s1695 = ssub.s32 %s28, 2
        // Predicated region
        $region101: #{tpu_custom_call.1} parent=99 // pred_check
          %p1696 = pneg %p339
        $region102: #{tpu_custom_call.1} parent=99 // pred_check_branch
          %1698 = sbr.rel (%p1696) target = $region104
        $region103: #{tpu_custom_call.1} parent=99 // pred_region
          %s1699 = sand.u32 %s324, 1
          %s1700 = scalar_lea.sflag [#allocation4], %s1699
          %s1701 = sand.u32 %s324, 1
          %s1702 = smul.addr %s1701, 32
          %s1703 = scalar_lea.vmem [#allocation14], %s1702
          %1705 = dma.done %s1700, 512
        $region104: #{tpu_custom_call.1} parent=99 // pred_fallthru
          _
      $region100: #{tpu_custom_call.1} parent=5 // pred_fallthru
        _
    $region6: #{tpu_custom_call.1} parent=1 // loop_footer
      %s32 = sadd.s32 1, %s28
    $region7: #{tpu_custom_call.1} parent=1 // loop_footer_branch
      %27 = sbr.rel target = $region3
    $region8: #{tpu_custom_call.1} parent=1 // loop_exit
      _
    %1706 = vsyncpa [#allocation3], 1
    %s1707 = scalar_lea.sflag [#allocation3], 1
    %1708 = vsyncpa %s1707, 1
    %1709 = vsyncpa [#allocation6], 1
    %s1710 = scalar_lea.sflag [#allocation6], 1
    %1711 = vsyncpa %s1710, 1
    %1712 = vsyncpa [#allocation9], 1
    %1713 = vsyncpa [#allocation12], 1
    %1714 = vsyncpa [#allocation4], 1
    %s1715 = scalar_lea.sflag [#allocation4], 1
    %1716 = vsyncpa %s1715, 1

</llo_original>
